<compile_context>
chip_gen: v7x
topology: tpu7x:2x2x1
jax: 0.10.0
libtpu: 0.0.40
codegen_flags: <defaults>
</compile_context>

<pallas_src>
import functools
import math

import jax
import jax.numpy as jnp
import numpy as np
from jax.experimental import pallas as pl
from jax.experimental.pallas import tpu as pltpu


def _gptj_attn_head_kernel(x_ref, wqkv_ref, wo_ref, cos_ref, sin_ref, o_ref, *,
                           head_dim):
    h = pl.program_id(1)
    S = x_ref.shape[0]
    half = head_dim // 2

    x = x_ref[...]                                        # (S, E) bf16

    # --- fused per-head QKV projection: one MXU pass, N = 3*Dh ---
    qkv = jnp.dot(x, wqkv_ref[...], preferred_element_type=jnp.float32)  # (S, 3*Dh) f32
    q = qkv[:, :head_dim]                                 # lane-aligned slices (Dh % 128 == 0)
    k = qkv[:, head_dim:2 * head_dim]
    v = qkv[:, 2 * head_dim:]

    # --- GPT-J rotary (de-interleaved layout): x*cos + roll(x, Dh/2)*sin_signed
    cos = cos_ref[...]                                    # (S, Dh)
    sin = sin_ref[...]                                    # (S, Dh), sign + zero padding folded in

    def rope(t):
        return t * cos + pltpu.roll(t, shift=half, axis=1) * sin

    q = rope(q)                                           # 1/sqrt(Dh) pre-folded into Wq
    k = rope(k)

    # --- causal attention (bf16 MXU feeds, f32 accumulation) ---
    s = jax.lax.dot_general(q.astype(jnp.bfloat16), k.astype(jnp.bfloat16),
                            (((1,), (1,)), ((), ())),
                            preferred_element_type=jnp.float32)          # (S, S)

    row = jax.lax.broadcasted_iota(jnp.int32, (S, 1), 0)
    col = jax.lax.broadcasted_iota(jnp.int32, (1, S), 1)
    s = jnp.where(row >= col, s, -jnp.inf)

    m = jnp.max(s, axis=-1, keepdims=True)
    p = jnp.exp(s - m)                                    # f32 exp (keep exact; bf16 exp optional on v6e/v7x)
    denom = jnp.sum(p, axis=-1, keepdims=True)

    attn = jnp.dot(p.astype(jnp.bfloat16), v.astype(jnp.bfloat16),
                   preferred_element_type=jnp.float32)                    # (S, Dh)
    attn = attn / denom                                   # exact normalization after PV

    # --- this head's out-projection contribution ---
    contrib = jnp.dot(attn.astype(jnp.bfloat16), wo_ref[...],
                      preferred_element_type=jnp.float32)                 # (S, E)

    @pl.when(h == 0)
    def _store():
        o_ref[...] = contrib

    @pl.when(h > 0)
    def _accum():
        o_ref[...] += contrib


def prepare_gptj_attention_weights(w_qkv, w_out, *, num_heads, rotary_dim, seq_len):
    """One-time weight prep (off the forward path).

    w_qkv: (3E, E) PyTorch nn.Linear(E, 3E).weight layout; w_out: (E, E).
    Returns (wqkv_heads bf16 (H,E,3Dh), wo_heads bf16 (H,Dh,E), COS f32 (S,Dh), SIN f32 (S,Dh)).
    """
    w_qkv = np.asarray(w_qkv, np.float32)
    w_out = np.asarray(w_out, np.float32)
    E3, E = w_qkv.shape
    assert E3 == 3 * E
    Dh = E // num_heads
    half = Dh // 2
    r2 = rotary_dim // 2
    assert Dh * num_heads == E and Dh % 2 == 0
    assert rotary_dim % 2 == 0 and rotary_dim <= Dh

    wq_t = np.ascontiguousarray(w_qkv[0 * E:1 * E].T)     # (E_in, E_out)
    wk_t = np.ascontiguousarray(w_qkv[1 * E:2 * E].T)
    wv_t = np.ascontiguousarray(w_qkv[2 * E:3 * E].T)
    wo_t = np.ascontiguousarray(w_out.T)

    # Per-head column permutation that de-interleaves the rotary dims:
    #   new[0:r2]         <- old even rotary indices (0, 2, ..., rot-2)
    #   new[half:half+r2] <- old odd rotary indices  (1, 3, ..., rot-1)
    #   remaining         <- pass-through dims (unchanged by rotary)
    # Applied to q AND k, so it cancels inside q.k^T; v / out_proj stay unpermuted.
    old_idx = np.empty((Dh,), np.int64)
    old_idx[:r2] = np.arange(0, rotary_dim, 2)
    old_idx[half:half + r2] = np.arange(1, rotary_dim, 2)
    pass_dims = np.arange(rotary_dim, Dh)
    old_idx[r2:half] = pass_dims[:half - r2]
    old_idx[half + r2:] = pass_dims[half - r2:]
    col_perm = (np.arange(num_heads)[:, None] * Dh + old_idx[None, :]).reshape(-1)

    wq_t = wq_t[:, col_perm] * np.float32(1.0 / math.sqrt(Dh))   # fold attn scale into Wq
    wk_t = wk_t[:, col_perm]

    def per_head(w):  # (E, H*Dh) -> (H, E, Dh), contiguous per head
        return np.ascontiguousarray(w.reshape(E, num_heads, Dh).transpose(1, 0, 2))

    wqkv_heads = np.concatenate([per_head(wq_t), per_head(wk_t), per_head(wv_t)],
                                axis=-1)                         # (H, E, 3*Dh)
    wo_heads = np.ascontiguousarray(wo_t.reshape(num_heads, Dh, E))  # (H, Dh, E)

    # Compact (S, Dh) rotary tables in the de-interleaved layout (sign folded into SIN).
    inv_freq = 1.0 / (10000.0 ** (np.arange(0, rotary_dim, 2, dtype=np.float32)
                                  / np.float32(rotary_dim)))
    sinusoid = np.arange(seq_len, dtype=np.float32)[:, None] * inv_freq[None, :]
    cos_h = np.cos(sinusoid).astype(np.float32)
    sin_h = np.sin(sinusoid).astype(np.float32)
    COS = np.ones((seq_len, Dh), np.float32)
    SIN = np.zeros((seq_len, Dh), np.float32)
    COS[:, :r2] = cos_h
    COS[:, half:half + r2] = cos_h
    SIN[:, :r2] = -sin_h                   # sign of rotate_every_two folded in
    SIN[:, half:half + r2] = sin_h

    return (jnp.asarray(wqkv_heads, jnp.bfloat16),
            jnp.asarray(wo_heads, jnp.bfloat16),
            jnp.asarray(COS), jnp.asarray(SIN))


def fused_gptj_attention(hidden_states, wqkv_heads, wo_heads, cos_tab, sin_tab):
    """hidden_states: (B, S, E).  Weights/tables from prepare_gptj_attention_weights."""
    B, S, E = hidden_states.shape
    H, E_in, three_dh = wqkv_heads.shape
    Dh = three_dh // 3
    assert E_in == E and H * Dh == E and cos_tab.shape == (S, Dh)

    x = hidden_states.astype(jnp.bfloat16)               # halve x DMA / VMEM
    kernel = functools.partial(_gptj_attn_head_kernel, head_dim=Dh)

    return pl.pallas_call(
        kernel,
        out_shape=jax.ShapeDtypeStruct((B, S, E), jnp.float32),
        grid_spec=pltpu.PrefetchScalarGridSpec(
            num_scalar_prefetch=0,
            grid=(B, H),
            in_specs=[
                pl.BlockSpec((None, S, E), lambda b, h: (b, 0, 0)),          # x (fetched once per b)
                pl.BlockSpec((None, E, three_dh), lambda b, h: (h, 0, 0)),   # fused W_qkv head block
                pl.BlockSpec((None, Dh, E), lambda b, h: (h, 0, 0)),         # W_out head block
                pl.BlockSpec((S, Dh), lambda b, h: (0, 0)),                  # cos table
                pl.BlockSpec((S, Dh), lambda b, h: (0, 0)),                  # signed sin table
            ],
            out_specs=pl.BlockSpec((None, S, E), lambda b, h: (b, 0, 0)),
        ),
        compiler_params=pltpu.CompilerParams(
            dimension_semantics=("parallel", "arbitrary"),
            vmem_limit_bytes=32 * 1024 * 1024),
    )(x, wqkv_heads, wo_heads, cos_tab, sin_tab)


# ---------------- pure-JAX reference (mirrors the PyTorch forward) ----------------
def _reference(hidden, w_qkv, w_out, num_heads, rotary_dim):
    B, S, E = hidden.shape
    Dh = E // num_heads
    qkv = hidden @ w_qkv.T                                  # (B,S,3E)
    qkv = qkv.reshape(B, S, 3, num_heads, Dh)
    q, k, v = qkv[:, :, 0], qkv[:, :, 1], qkv[:, :, 2]      # (B,S,H,Dh)

    inv_freq = 1.0 / (10000.0 ** (jnp.arange(0, rotary_dim, 2, dtype=jnp.float32)
                                  / rotary_dim))
    sinusoid = jnp.einsum('i,j->ij', jnp.arange(S, dtype=jnp.float32), inv_freq)
    sin_d = jnp.repeat(jnp.sin(sinusoid), 2, axis=1)[None, :, None, :]
    cos_d = jnp.repeat(jnp.cos(sinusoid), 2, axis=1)[None, :, None, :]

    def rot2(x):
        x1 = x[..., ::2]
        x2 = x[..., 1::2]
        return jnp.stack([-x2, x1], axis=-1).reshape(x.shape)

    def apply_rot(x):
        xr, xp = x[..., :rotary_dim], x[..., rotary_dim:]
        xr = xr * cos_d + rot2(xr) * sin_d
        return jnp.concatenate([xr, xp], axis=-1)

    q, k = apply_rot(q), apply_rot(k)
    q, k, v = (t.transpose(0, 2, 1, 3) for t in (q, k, v))  # (B,H,S,Dh)
    scores = jnp.einsum('bhqd,bhkd->bhqk', q, k) / math.sqrt(Dh)
    mask = jnp.tril(jnp.ones((S, S), bool))
    scores = jnp.where(mask, scores, -jnp.inf)
    p = jax.nn.softmax(scores, axis=-1)
    attn = jnp.einsum('bhqk,bhkd->bhqd', p, v)
    attn = attn.transpose(0, 2, 1, 3).reshape(B, S, E)
    return attn @ w_out.T


if __name__ == "__main__":
    # small but TPU-tile-friendly shapes: head_dim = 128, rotary_dim = 32
    B, S, E = 2, 128, 256
    num_heads, rotary_dim = 2, 32

    key = jax.random.PRNGKey(0)
    k1, k2, k3 = jax.random.split(key, 3)
    hidden = jax.random.normal(k1, (B, S, E), jnp.float32)
    w_qkv = jax.random.normal(k2, (3 * E, E), jnp.float32) * 0.05   # nn.Linear(E, 3E).weight
    w_out = jax.random.normal(k3, (E, E), jnp.float32) * 0.05       # nn.Linear(E, E).weight

    wqkv_heads, wo_heads, cos_tab, sin_tab = prepare_gptj_attention_weights(
        w_qkv, w_out, num_heads=num_heads, rotary_dim=rotary_dim, seq_len=S)

    out = fused_gptj_attention(hidden, wqkv_heads, wo_heads, cos_tab, sin_tab)
    out = jax.block_until_ready(out)

    ref = _reference(hidden, w_qkv, w_out, num_heads, rotary_dim)
    # bf16 MXU feeds (kernel) vs f32 reference -> bf16-level tolerance.
    np.testing.assert_allclose(np.asarray(out), np.asarray(ref), atol=5e-2, rtol=5e-2)

    print("KERNEL_OK")
</pallas_src>

<mosaic_0001>
module attributes {stable_mosaic.version = 11 : i64} {
  func.func @_gptj_attn_head_kernel(%arg0: i32, %arg1: i32, %arg2: memref<1x128x256xbf16, #tpu.memory_space<vmem>>, %arg3: memref<1x256x384xbf16, #tpu.memory_space<vmem>>, %arg4: memref<1x128x256xbf16, #tpu.memory_space<vmem>>, %arg5: memref<128x128xf32, #tpu.memory_space<vmem>>, %arg6: memref<128x128xf32, #tpu.memory_space<vmem>>, %arg7: memref<1x128x256xf32, #tpu.memory_space<vmem>>) attributes {dimension_semantics = [#tpu.dimension_semantics<parallel>, #tpu.dimension_semantics<arbitrary>], iteration_bounds = array<i64: 2, 2>, scalar_prefetch = 0 : i64, scratch_operands = 0 : i64, tpu.core_type = #tpu.core_type<tc>, window_params = [{transform_indices = @transform_0, window_bounds = array<i64: 1, 128, 256>}, {transform_indices = @transform_1, window_bounds = array<i64: 1, 256, 384>}, {transform_indices = @transform_2, window_bounds = array<i64: 1, 128, 256>}, {pipeline_mode = #tpu.pipeline_mode<synchronous>, transform_indices = @transform_3, window_bounds = array<i64: 128, 128>}, {pipeline_mode = #tpu.pipeline_mode<synchronous>, transform_indices = @transform_4, window_bounds = array<i64: 128, 128>}, {transform_indices = @transform_5, window_bounds = array<i64: 1, 128, 256>}]} {
    %c0 = arith.constant 0 : index
    %c0_0 = arith.constant 0 : index
    %c0_1 = arith.constant 0 : index
    %0 = vector.load %arg2[%c0, %c0_0, %c0_1] : memref<1x128x256xbf16, #tpu.memory_space<vmem>>, vector<1x128x256xbf16>
    %1 = vector.shape_cast %0 : vector<1x128x256xbf16> to vector<128x256xbf16>
    %c0_2 = arith.constant 0 : index
    %c0_3 = arith.constant 0 : index
    %c0_4 = arith.constant 0 : index
    %2 = vector.load %arg3[%c0_2, %c0_3, %c0_4] : memref<1x256x384xbf16, #tpu.memory_space<vmem>>, vector<1x256x384xbf16>
    %3 = vector.shape_cast %2 : vector<1x256x384xbf16> to vector<256x384xbf16>
    %cst = arith.constant dense<0.000000e+00> : vector<128x384xf32>
    %4 = tpu.matmul %1, %3, %cst {dimension_numbers = #tpu.dot_dimension_numbers<[1], [0], [0], [1], [0, 0, 1, 1], [], []>} : vector<128x256xbf16>, vector<256x384xbf16>, vector<128x384xf32> -> vector<128x384xf32>
    %5 = vector.extract_strided_slice %4 {offsets = [0, 0], sizes = [128, 128], strides = [1, 1]} : vector<128x384xf32> to vector<128x128xf32>
    %6 = vector.extract_strided_slice %4 {offsets = [0, 128], sizes = [128, 128], strides = [1, 1]} : vector<128x384xf32> to vector<128x128xf32>
    %7 = vector.extract_strided_slice %4 {offsets = [0, 256], sizes = [128, 128], strides = [1, 1]} : vector<128x384xf32> to vector<128x128xf32>
    %c0_5 = arith.constant 0 : index
    %c0_6 = arith.constant 0 : index
    %8 = vector.load %arg5[%c0_5, %c0_6] : memref<128x128xf32, #tpu.memory_space<vmem>>, vector<128x128xf32>
    %c0_7 = arith.constant 0 : index
    %c0_8 = arith.constant 0 : index
    %9 = vector.load %arg6[%c0_7, %c0_8] : memref<128x128xf32, #tpu.memory_space<vmem>>, vector<128x128xf32>
    %10 = arith.mulf %5, %8 : vector<128x128xf32>
    %c64_i32 = arith.constant 64 : i32
    %11 = tpu.dynamic_rotate %5 by %c64_i32 dim 1 : vector<128x128xf32>, i32 -> vector<128x128xf32>
    %12 = arith.mulf %11, %9 : vector<128x128xf32>
    %13 = arith.addf %10, %12 : vector<128x128xf32>
    %14 = arith.mulf %6, %8 : vector<128x128xf32>
    %c64_i32_9 = arith.constant 64 : i32
    %15 = tpu.dynamic_rotate %6 by %c64_i32_9 dim 1 : vector<128x128xf32>, i32 -> vector<128x128xf32>
    %16 = arith.mulf %15, %9 : vector<128x128xf32>
    %17 = arith.addf %14, %16 : vector<128x128xf32>
    %18 = arith.truncf %13 : vector<128x128xf32> to vector<128x128xbf16>
    %19 = arith.truncf %17 : vector<128x128xf32> to vector<128x128xbf16>
    %cst_10 = arith.constant dense<0.000000e+00> : vector<128x128xf32>
    %20 = tpu.matmul %18, %19, %cst_10 {dimension_numbers = #tpu.dot_dimension_numbers<[1], [1], [0], [0], [0, 0, 1, 0], [], []>} : vector<128x128xbf16>, vector<128x128xbf16>, vector<128x128xf32> -> vector<128x128xf32>
    %21 = tpu.iota {dimensions = array<i32: 0>} : vector<128x1xi32>
    %22 = tpu.iota {dimensions = array<i32: 1>} : vector<1x128xi32>
    %23 = vector.broadcast %21 : vector<128x1xi32> to vector<128x128xi32>
    %24 = vector.broadcast %22 : vector<1x128xi32> to vector<128x128xi32>
    %25 = arith.cmpi sge, %23, %24 : vector<128x128xi32>
    %cst_11 = arith.constant 0xFF800000 : f32
    %26 = vector.broadcast %cst_11 : f32 to vector<128x128xf32>
    %27 = arith.select %25, %20, %26 : vector<128x128xi1>, vector<128x128xf32>
    %cst_12 = arith.constant dense<0xFF800000> : vector<128xf32>
    %28 = vector.multi_reduction <maximumf>, %27, %cst_12 [1] : vector<128x128xf32> to vector<128xf32>
    %29 = vector.shape_cast %28 : vector<128xf32> to vector<128x1xf32>
    %30 = vector.broadcast %29 : vector<128x1xf32> to vector<128x128xf32>
    %31 = arith.subf %27, %30 : vector<128x128xf32>
    %32 = math.exp %31 : vector<128x128xf32>
    %cst_13 = arith.constant dense<0.000000e+00> : vector<128xf32>
    %33 = vector.multi_reduction <add>, %32, %cst_13 [1] : vector<128x128xf32> to vector<128xf32>
    %34 = vector.shape_cast %33 : vector<128xf32> to vector<128x1xf32>
    %35 = arith.truncf %32 : vector<128x128xf32> to vector<128x128xbf16>
    %36 = arith.truncf %7 : vector<128x128xf32> to vector<128x128xbf16>
    %cst_14 = arith.constant dense<0.000000e+00> : vector<128x128xf32>
    %37 = tpu.matmul %35, %36, %cst_14 {dimension_numbers = #tpu.dot_dimension_numbers<[1], [0], [0], [1], [0, 0, 1, 1], [], []>} : vector<128x128xbf16>, vector<128x128xbf16>, vector<128x128xf32> -> vector<128x128xf32>
    %38 = vector.broadcast %34 : vector<128x1xf32> to vector<128x128xf32>
    %39 = arith.divf %37, %38 : vector<128x128xf32>
    %40 = arith.truncf %39 : vector<128x128xf32> to vector<128x128xbf16>
    %c0_15 = arith.constant 0 : index
    %c0_16 = arith.constant 0 : index
    %c0_17 = arith.constant 0 : index
    %41 = vector.load %arg4[%c0_15, %c0_16, %c0_17] : memref<1x128x256xbf16, #tpu.memory_space<vmem>>, vector<1x128x256xbf16>
    %42 = vector.shape_cast %41 : vector<1x128x256xbf16> to vector<128x256xbf16>
    %cst_18 = arith.constant dense<0.000000e+00> : vector<128x256xf32>
    %43 = tpu.matmul %40, %42, %cst_18 {dimension_numbers = #tpu.dot_dimension_numbers<[1], [0], [0], [1], [0, 0, 1, 1], [], []>} : vector<128x128xbf16>, vector<128x256xbf16>, vector<128x256xf32> -> vector<128x256xf32>
    %c0_i32 = arith.constant 0 : i32
    %44 = arith.cmpi eq, %arg1, %c0_i32 : i32
    %45 = arith.extui %44 : i1 to i32
    %c0_i32_19 = arith.constant 0 : i32
    %46 = arith.cmpi ne, %45, %c0_i32_19 : i32
    scf.if %46 {
      %c0_22 = arith.constant 0 : index
      %c0_23 = arith.constant 0 : index
      %c0_24 = arith.constant 0 : index
      %50 = vector.load %arg7[%c0_22, %c0_23, %c0_24] : memref<1x128x256xf32, #tpu.memory_space<vmem>>, vector<1x128x256xf32>
      %51 = vector.shape_cast %50 : vector<1x128x256xf32> to vector<128x256xf32>
      %52 = vector.shape_cast %43 : vector<128x256xf32> to vector<1x128x256xf32>
      tpu.vector_store %arg7[%c0_22, %c0_23, %c0_24], %52 {strides = array<i32>} : memref<1x128x256xf32, #tpu.memory_space<vmem>>, vector<1x128x256xf32>,
    } else {
    }
    %c0_i32_20 = arith.constant 0 : i32
    %47 = arith.cmpi sgt, %arg1, %c0_i32_20 : i32
    %48 = arith.extui %47 : i1 to i32
    %c0_i32_21 = arith.constant 0 : i32
    %49 = arith.cmpi ne, %48, %c0_i32_21 : i32
    scf.if %49 {
      %c0_22 = arith.constant 0 : index
      %c0_23 = arith.constant 0 : index
      %c0_24 = arith.constant 0 : index
      %50 = vector.load %arg7[%c0_22, %c0_23, %c0_24] : memref<1x128x256xf32, #tpu.memory_space<vmem>>, vector<1x128x256xf32>
      %51 = vector.shape_cast %50 : vector<1x128x256xf32> to vector<128x256xf32>
      %52 = arith.addf %51, %43 : vector<128x256xf32>
      %c0_25 = arith.constant 0 : index
      %c0_26 = arith.constant 0 : index
      %c0_27 = arith.constant 0 : index
      %53 = vector.load %arg7[%c0_25, %c0_26, %c0_27] : memref<1x128x256xf32, #tpu.memory_space<vmem>>, vector<1x128x256xf32>
      %54 = vector.shape_cast %53 : vector<1x128x256xf32> to vector<128x256xf32>
      %55 = vector.shape_cast %52 : vector<128x256xf32> to vector<1x128x256xf32>
      tpu.vector_store %arg7[%c0_25, %c0_26, %c0_27], %55 {strides = array<i32>} : memref<1x128x256xf32, #tpu.memory_space<vmem>>, vector<1x128x256xf32>,
    } else {
    }
    return
  }
  func.func @transform_0(%arg0: i32, %arg1: i32) -> (i32, i32, i32) {
    %c0_i32 = arith.constant 0 : i32
    %c0_i32_0 = arith.constant 0 : i32
    %c0_i32_1 = arith.constant 0 : i32
    return %arg0, %c0_i32, %c0_i32_0 : i32, i32, i32
  }
  func.func @transform_1(%arg0: i32, %arg1: i32) -> (i32, i32, i32) {
    %c0_i32 = arith.constant 0 : i32
    %c0_i32_0 = arith.constant 0 : i32
    %c0_i32_1 = arith.constant 0 : i32
    return %arg1, %c0_i32, %c0_i32_0 : i32, i32, i32
  }
  func.func @transform_2(%arg0: i32, %arg1: i32) -> (i32, i32, i32) {
    %c0_i32 = arith.constant 0 : i32
    %c0_i32_0 = arith.constant 0 : i32
    %c0_i32_1 = arith.constant 0 : i32
    return %arg1, %c0_i32, %c0_i32_0 : i32, i32, i32
  }
  func.func @transform_3(%arg0: i32, %arg1: i32) -> (i32, i32) {
    %c0_i32 = arith.constant 0 : i32
    %c0_i32_0 = arith.constant 0 : i32
    %c0_i32_1 = arith.constant 0 : i32
    return %c0_i32, %c0_i32_0 : i32, i32
  }
  func.func @transform_4(%arg0: i32, %arg1: i32) -> (i32, i32) {
    %c0_i32 = arith.constant 0 : i32
    %c0_i32_0 = arith.constant 0 : i32
    %c0_i32_1 = arith.constant 0 : i32
    return %c0_i32, %c0_i32_0 : i32, i32
  }
  func.func @transform_5(%arg0: i32, %arg1: i32) -> (i32, i32, i32) {
    %c0_i32 = arith.constant 0 : i32
    %c0_i32_0 = arith.constant 0 : i32
    %c0_i32_1 = arith.constant 0 : i32
    return %arg0, %c0_i32, %c0_i32_0 : i32, i32, i32
  }
}

</mosaic_0001>

<llo_original>
// kernel: tpu_custom_call.1
$region0: #{tpu_custom_call.1}
  #allocation0 [shape = 'u32[]', space=smem, size = 0x4, offset = 0x4, fixed_abs, tag = 'smem constant byte address 0x4 - core index']
  #allocation1 [shape = 'u32[144,128]{1,0:T(1,128)}', space=vmem, size = 0x12000, scoped, tag = 'internal scratch']
  %s0 = inlined_call_operand.hbm [shape: bf16[2,128,256], index: 0, kind: input, shape index: {}]
  %s1 = inlined_call_operand.hbm [shape: bf16[2,256,384], index: 1, kind: input, shape index: {}]
  %s2 = inlined_call_operand.hbm [shape: bf16[2,128,256], index: 2, kind: input, shape index: {}]
  %s3 = inlined_call_operand.hbm [shape: f32[128,128], index: 3, kind: input, shape index: {}]
  %s4 = inlined_call_operand.hbm [shape: f32[128,128], index: 4, kind: input, shape index: {}]
  %s5 = inlined_call_operand.hbm [shape: f32[2,128,256], index: 5, kind: output, shape index: {}]
  %s6 = sld [smem:[#allocation0]]
  $region81: #{tpu_custom_call.1} parent=0
    _
  %s8 = ssub.s32 1, %s6
  %s9 = scalar_select 0, %s8, %s6
  $region1: #{tpu_custom_call.1} parent=0
    #allocation2 [shape = 'u8[131072]{0}', space=vmem, size = 0x20000, scoped, tag = 'input window, operand 0']
    #allocation3 [shape = 's32[2]{0}', space=sflag, size = 0x8, scoped, tag = 'scoped memory for tpu_custom_call.1']
    #allocation4 [shape = 's32[2]{0}', space=sflag, size = 0x8, scoped, tag = 'scoped memory for tpu_custom_call.1']
    #allocation5 [shape = 'u8[393216]{0}', space=vmem, size = 0x60000, scoped, tag = 'input window, operand 1']
    #allocation6 [shape = 's32[2]{0}', space=sflag, size = 0x8, scoped, tag = 'scoped memory for tpu_custom_call.1']
    #allocation7 [shape = 'u8[131072]{0}', space=vmem, size = 0x20000, scoped, tag = 'input window, operand 2']
    #allocation8 [shape = 'u8[65536]{0}', space=vmem, size = 0x10000, scoped, tag = 'input window, operand 3, single buffered']
    #allocation9 [shape = 's32[1]{0}', space=sflag, size = 0x4, scoped, tag = 'scoped memory for tpu_custom_call.1']
    #allocation10 [shape = 'u8[65536]{0}', space=vmem, size = 0x10000, scoped, tag = 'input window, operand 4, single buffered']
    #allocation11 [shape = 'u8[262144]{0}', space=vmem, size = 0x40000, scoped, tag = 'output window, operand 0']
    %10 = vsyncpa [#allocation3], 0
    %s11 = scalar_lea.sflag [#allocation3], 1
    %12 = vsyncpa %s11, 0
    %13 = vsyncpa [#allocation6], 0
    %s14 = scalar_lea.sflag [#allocation6], 1
    %15 = vsyncpa %s14, 0
    %16 = vsyncpa [#allocation9], 0
    %17 = vsyncpa [#allocation4], 0
    %s18 = scalar_lea.sflag [#allocation4], 1
    %19 = vsyncpa %s18, 0
    loop: start=0, step=1, limit=6
    $region2: #{tpu_custom_call.1} parent=1 // loop_pre_header
      _
    $region3: #{tpu_custom_call.1} parent=1 // loop_header
      %s21 = sphi 0, %s25
      %p22 = scmp.ge.s32.totalorder %s21, 6
      %s28 = sphi 0, %s40
      %s29 = sphi 0, %s36
      %s30 = sphi 0, %s28
      %s31 = sphi 0, %s29
      %s32 = sphi 0, %s30
      %s33 = sphi 0, %s31
      %s43 = sphi 0, %s45
      %s46 = sphi 0, %s43
      %s47 = sphi 0, %s46
      %s63 = sphi 0, %s47
      %s69 = sphi 0, %s71
      %s72 = sphi 0, %s69
      %s73 = sphi 0, %s72
      %s89 = sphi 0, %s73
      %s95 = sphi 0, %s97
      %s98 = sphi 0, %s95
      %s99 = sphi 0, %s98
      %s115 = sphi 0, %s99
      %s119 = sphi 0, %s119
      %s121 = sphi 0, %s119
      %s122 = sphi 0, %s121
      %s136 = sphi 0, %s122
      %s140 = sphi 0, %s140
      %s142 = sphi 0, %s140
      %s143 = sphi 0, %s142
      %s157 = sphi 0, %s143
      %s163 = sphi 0, %s165
      %s166 = sphi 0, %s163
      %s167 = sphi 0, %s166
      %s183 = sphi 0, %s167
    $region4: #{tpu_custom_call.1} parent=1 // loop_header_branch
      %24 = sbr.rel (%p22) target = $region8
    $region5: #{tpu_custom_call.1} parent=1 // loop_body
      %s26 = ssub.s32 %s21, 1
      %s27 = ssub.s32 %s21, 2
      %s34 = sadd.s32 1, %s29
      %p35 = scmp.ge.s32.totalorder %s34, 2
      %s36 = scalar_select %p35, 0, %s34
      %s37 = sadd.s32 1, %s28
      %s38 = scalar_select %p35, %s37, %s28
      %p39 = scmp.ge.s32.totalorder %s38, 2
      %s40 = scalar_select %p39, 0, %s38
      %s41 = ssub.s32 %s28, %s40
      %p42 = scmp.eq.s32.totalorder %s41, 0
      %s44 = sadd.s32 %s43, 1
      %s45 = scalar_select %p42, %s43, %s44
      %p48 = pneg %p42
      %p49 = scmp.eq.s32.totalorder %s21, 3
      %p50 = por %p48, %p49
      %p51 = scmp.ne.s32.totalorder %s43, %s46
      %p52 = scmp.eq.s32.totalorder %s21, 0
      %p53 = por %p51, %p52
      %p54 = scmp.ne.s32.totalorder %s43, %s46
      %p55 = scmp.eq.s32.totalorder %s26, 3
      %p56 = por %p54, %p55
      %p57 = scmp.ne.s32.totalorder %s46, %s47
      %p58 = scmp.eq.s32.totalorder %s26, 0
      %p59 = por %p57, %p58
      %p60 = scmp.ne.s32.totalorder %s46, %s47
      %p61 = scmp.eq.s32.totalorder %s27, 3
      %p62 = por %p60, %p61
      %p64 = scmp.ne.s32.totalorder %s47, %s63
      %p65 = scmp.eq.s32.totalorder %s27, 0
      %p66 = por %p64, %p65
      %s67 = ssub.s32 %s29, %s36
      %p68 = scmp.eq.s32.totalorder %s67, 0
      %s70 = sadd.s32 %s69, 1
      %s71 = scalar_select %p68, %s69, %s70
      %p74 = pneg %p68
      %p75 = scmp.eq.s32.totalorder %s21, 3
      %p76 = por %p74, %p75
      %p77 = scmp.ne.s32.totalorder %s69, %s72
      %p78 = scmp.eq.s32.totalorder %s21, 0
      %p79 = por %p77, %p78
      %p80 = scmp.ne.s32.totalorder %s69, %s72
      %p81 = scmp.eq.s32.totalorder %s26, 3
      %p82 = por %p80, %p81
      %p83 = scmp.ne.s32.totalorder %s72, %s73
      %p84 = scmp.eq.s32.totalorder %s26, 0
      %p85 = por %p83, %p84
      %p86 = scmp.ne.s32.totalorder %s72, %s73
      %p87 = scmp.eq.s32.totalorder %s27, 3
      %p88 = por %p86, %p87
      %p90 = scmp.ne.s32.totalorder %s73, %s89
      %p91 = scmp.eq.s32.totalorder %s27, 0
      %p92 = por %p90, %p91
      %s93 = ssub.s32 %s29, %s36
      %p94 = scmp.eq.s32.totalorder %s93, 0
      %s96 = sadd.s32 %s95, 1
      %s97 = scalar_select %p94, %s95, %s96
      %p100 = pneg %p94
      %p101 = scmp.eq.s32.totalorder %s21, 3
      %p102 = por %p100, %p101
      %p103 = scmp.ne.s32.totalorder %s95, %s98
      %p104 = scmp.eq.s32.totalorder %s21, 0
      %p105 = por %p103, %p104
      %p106 = scmp.ne.s32.totalorder %s95, %s98
      %p107 = scmp.eq.s32.totalorder %s26, 3
      %p108 = por %p106, %p107
      %p109 = scmp.ne.s32.totalorder %s98, %s99
      %p110 = scmp.eq.s32.totalorder %s26, 0
      %p111 = por %p109, %p110
      %p112 = scmp.ne.s32.totalorder %s98, %s99
      %p113 = scmp.eq.s32.totalorder %s27, 3
      %p114 = por %p112, %p113
      %p116 = scmp.ne.s32.totalorder %s99, %s115
      %p117 = scmp.eq.s32.totalorder %s27, 0
      %p118 = por %p116, %p117
      %s120 = sadd.s32 %s119, 1
      %p123 = scmp.eq.s32.totalorder %s21, 3
      %p124 = scmp.ne.s32.totalorder %s119, %s121
      %p125 = scmp.eq.s32.totalorder %s21, 0
      %p126 = por %p124, %p125
      %p127 = scmp.ne.s32.totalorder %s119, %s121
      %p128 = scmp.eq.s32.totalorder %s26, 3
      %p129 = por %p127, %p128
      %p130 = scmp.ne.s32.totalorder %s121, %s122
      %p131 = scmp.eq.s32.totalorder %s26, 0
      %p132 = por %p130, %p131
      %p133 = scmp.ne.s32.totalorder %s121, %s122
      %p134 = scmp.eq.s32.totalorder %s27, 3
      %p135 = por %p133, %p134
      %p137 = scmp.ne.s32.totalorder %s122, %s136
      %p138 = scmp.eq.s32.totalorder %s27, 0
      %p139 = por %p137, %p138
      %s141 = sadd.s32 %s140, 1
      %p144 = scmp.eq.s32.totalorder %s21, 3
      %p145 = scmp.ne.s32.totalorder %s140, %s142
      %p146 = scmp.eq.s32.totalorder %s21, 0
      %p147 = por %p145, %p146
      %p148 = scmp.ne.s32.totalorder %s140, %s142
      %p149 = scmp.eq.s32.totalorder %s26, 3
      %p150 = por %p148, %p149
      %p151 = scmp.ne.s32.totalorder %s142, %s143
      %p152 = scmp.eq.s32.totalorder %s26, 0
      %p153 = por %p151, %p152
      %p154 = scmp.ne.s32.totalorder %s142, %s143
      %p155 = scmp.eq.s32.totalorder %s27, 3
      %p156 = por %p154, %p155
      %p158 = scmp.ne.s32.totalorder %s143, %s157
      %p159 = scmp.eq.s32.totalorder %s27, 0
      %p160 = por %p158, %p159
      %s161 = ssub.s32 %s28, %s40
      %p162 = scmp.eq.s32.totalorder %s161, 0
      %s164 = sadd.s32 %s163, 1
      %s165 = scalar_select %p162, %s163, %s164
      %p168 = pneg %p162
      %p169 = scmp.eq.s32.totalorder %s21, 3
      %p170 = por %p168, %p169
      %p171 = scmp.ne.s32.totalorder %s163, %s166
      %p172 = scmp.eq.s32.totalorder %s21, 0
      %p173 = por %p171, %p172
      %p174 = scmp.ne.s32.totalorder %s163, %s166
      %p175 = scmp.eq.s32.totalorder %s26, 3
      %p176 = por %p174, %p175
      %p177 = scmp.ne.s32.totalorder %s166, %s167
      %p178 = scmp.eq.s32.totalorder %s26, 0
      %p179 = por %p177, %p178
      %p180 = scmp.ne.s32.totalorder %s166, %s167
      %p181 = scmp.eq.s32.totalorder %s27, 3
      %p182 = por %p180, %p181
      %p184 = scmp.ne.s32.totalorder %s167, %s183
      %p185 = scmp.eq.s32.totalorder %s27, 0
      %p186 = por %p184, %p185
      %p187 = scmp.le.s32.totalorder 1, %s21
      %p188 = scmp.lt.s32.totalorder %s21, 5
      %p189 = pnand %p187, %p188
      %p190 = pneg %p189
      // Predicated region
      $region9: #{tpu_custom_call.1} parent=5 // pred_check
        _
      $region10: #{tpu_custom_call.1} parent=5 // pred_check_branch
        %192 = sbr.rel (%p189) target = $region12
      $region11: #{tpu_custom_call.1} parent=5 // pred_region
        %s193 = ssub.s32 %s21, 1
        // Predicated region
        $region13: #{tpu_custom_call.1} parent=11 // pred_check
          %p194 = pneg %p132
        $region14: #{tpu_custom_call.1} parent=11 // pred_check_branch
          %196 = sbr.rel (%p194) target = $region16
        $region15: #{tpu_custom_call.1} parent=11 // pred_region
          %s198 = ssub.s32 2048, 2048
          %199 = vsyncadd [#allocation9], %s198
          %s200 = sshll.u32 [#allocation8], 4
          %s201 = int_to_ptr.vmem [resolvable:$true] %s200
          %206 = dma.hbm_to_vmem [thread:$0]  %s3, 2048, %s201, [#allocation9], 128, 128, 8
        $region16: #{tpu_custom_call.1} parent=11 // pred_fallthru
          _
        // Predicated region
        $region17: #{tpu_custom_call.1} parent=11 // pred_check
          %p207 = pneg %p153
        $region18: #{tpu_custom_call.1} parent=11 // pred_check_branch
          %209 = sbr.rel (%p207) target = $region20
        $region19: #{tpu_custom_call.1} parent=11 // pred_region
          %s211 = ssub.s32 2048, 2048
          %212 = vsyncadd [#allocation9], %s211
          %s213 = sshll.u32 [#allocation10], 4
          %s214 = int_to_ptr.vmem [resolvable:$true] %s213
          %219 = dma.hbm_to_vmem [thread:$0]  %s4, 2048, %s214, [#allocation9], 128, 128, 8
        $region20: #{tpu_custom_call.1} parent=11 // pred_fallthru
          _
      $region12: #{tpu_custom_call.1} parent=5 // pred_fallthru
        _
      %p220 = scmp.lt.s32.totalorder %s21, 4
      // Predicated region
      $region21: #{tpu_custom_call.1} parent=5 // pred_check
        %p221 = pneg %p220
      $region22: #{tpu_custom_call.1} parent=5 // pred_check_branch
        %223 = sbr.rel (%p221) target = $region24
      $region23: #{tpu_custom_call.1} parent=5 // pred_region
        // Predicated region
        $region25: #{tpu_custom_call.1} parent=23 // pred_check
          %p224 = pneg %p53
        $region26: #{tpu_custom_call.1} parent=23 // pred_check_branch
          %226 = sbr.rel (%p224) target = $region28
        $region27: #{tpu_custom_call.1} parent=23 // pred_region
          %s227 = sand.u32 %s43, 1
          %s228 = scalar_lea.sflag [#allocation3], %s227
          %s229 = sand.u32 %s43, 1
          %s230 = smul.addr %s229, 128
          %s231 = scalar_lea.vmem [#allocation2], %s230
          %s233 = ssub.s32 2048, 2048
          %234 = vsyncadd %s228, %s233
          %s235 = smul.addr %s28, 32
          %s236 = smul.addr %s235, 64
          %s237 = scalar_lea.hbm %s0, %s236
          %s238 = sshll.u32 %s231, 4
          %s239 = int_to_ptr.vmem [resolvable:$true] %s238
          %244 = dma.hbm_to_vmem [thread:$0]  %s237, 2048, %s239, %s228, 128, 128, 8
        $region28: #{tpu_custom_call.1} parent=23 // pred_fallthru
          _
        // Predicated region
        $region29: #{tpu_custom_call.1} parent=23 // pred_check
          %p245 = pneg %p79
        $region30: #{tpu_custom_call.1} parent=23 // pred_check_branch
          %247 = sbr.rel (%p245) target = $region32
        $region31: #{tpu_custom_call.1} parent=23 // pred_region
          %s248 = sand.u32 %s21, 1
          %s249 = scalar_lea.sflag [#allocation6], %s248
          %s250 = sand.u32 %s69, 1
          %s251 = smul.addr %s250, 384
          %s252 = scalar_lea.vmem [#allocation5], %s251
          %s254 = ssub.s32 6144, 6144
          %255 = vsyncadd %s249, %s254
          %s256 = smul.addr %s29, 96
          %s257 = smul.addr %s256, 64
          %s258 = scalar_lea.hbm %s1, %s257
          %s259 = sshll.u32 %s252, 4
          %s260 = int_to_ptr.vmem [resolvable:$true] %s259
          %265 = dma.hbm_to_vmem [thread:$0]  %s258, 6144, %s260, %s249, 192, 192, 12
        $region32: #{tpu_custom_call.1} parent=23 // pred_fallthru
          _
        // Predicated region
        $region33: #{tpu_custom_call.1} parent=23 // pred_check
          %p266 = pneg %p105
        $region34: #{tpu_custom_call.1} parent=23 // pred_check_branch
          %268 = sbr.rel (%p266) target = $region36
        $region35: #{tpu_custom_call.1} parent=23 // pred_region
          %s269 = sand.u32 %s21, 1
          %s270 = scalar_lea.sflag [#allocation6], %s269
          %s271 = sand.u32 %s95, 1
          %s272 = smul.addr %s271, 128
          %s273 = scalar_lea.vmem [#allocation7], %s272
          %s275 = ssub.s32 2048, 2048
          %276 = vsyncadd %s270, %s275
          %s277 = smul.addr %s29, 32
          %s278 = smul.addr %s277, 64
          %s279 = scalar_lea.hbm %s2, %s278
          %s280 = sshll.u32 %s273, 4
          %s281 = int_to_ptr.vmem [resolvable:$true] %s280
          %286 = dma.hbm_to_vmem [thread:$0]  %s279, 2048, %s281, %s270, 128, 128, 8
        $region36: #{tpu_custom_call.1} parent=23 // pred_fallthru
          _
      $region24: #{tpu_custom_call.1} parent=5 // pred_fallthru
        _
      %p287 = scmp.le.s32.totalorder 1, %s21
      %p288 = scmp.lt.s32.totalorder %s21, 5
      %p289 = pnand %p287, %p288
      %p290 = pneg %p289
      // Predicated region
      $region37: #{tpu_custom_call.1} parent=5 // pred_check
        _
      $region38: #{tpu_custom_call.1} parent=5 // pred_check_branch
        %292 = sbr.rel (%p289) target = $region40
      $region39: #{tpu_custom_call.1} parent=5 // pred_region
        %s293 = ssub.s32 %s21, 1
        %s294 = sand.u32 %s46, 1
        %s295 = scalar_lea.sflag [#allocation3], %s294
        %s296 = sand.u32 %s46, 1
        %s297 = smul.addr %s296, 128
        %s298 = scalar_lea.vmem [#allocation2], %s297
        // Predicated region
        $region41: #{tpu_custom_call.1} parent=39 // pred_check
          %p299 = pneg %p59
        $region42: #{tpu_custom_call.1} parent=39 // pred_check_branch
          %301 = sbr.rel (%p299) target = $region44
        $region43: #{tpu_custom_call.1} parent=39 // pred_region
          %302 = dma.done %s295, 2048
        $region44: #{tpu_custom_call.1} parent=39 // pred_fallthru
          _
        %s303 = sand.u32 %s26, 1
        %s304 = scalar_lea.sflag [#allocation6], %s303
        %s305 = sand.u32 %s72, 1
        %s306 = smul.addr %s305, 384
        %s307 = scalar_lea.vmem [#allocation5], %s306
        // Predicated region
        $region45: #{tpu_custom_call.1} parent=39 // pred_check
          %p308 = pneg %p85
        $region46: #{tpu_custom_call.1} parent=39 // pred_check_branch
          %310 = sbr.rel (%p308) target = $region48
        $region47: #{tpu_custom_call.1} parent=39 // pred_region
          %311 = dma.done %s304, 6144
        $region48: #{tpu_custom_call.1} parent=39 // pred_fallthru
          _
        %s312 = sand.u32 %s26, 1
        %s313 = scalar_lea.sflag [#allocation6], %s312
        %s314 = sand.u32 %s98, 1
        %s315 = smul.addr %s314, 128
        %s316 = scalar_lea.vmem [#allocation7], %s315
        // Predicated region
        $region49: #{tpu_custom_call.1} parent=39 // pred_check
          %p317 = pneg %p111
        $region50: #{tpu_custom_call.1} parent=39 // pred_check_branch
          %319 = sbr.rel (%p317) target = $region52
        $region51: #{tpu_custom_call.1} parent=39 // pred_region
          %320 = dma.done %s313, 2048
        $region52: #{tpu_custom_call.1} parent=39 // pred_fallthru
          _
        // Predicated region
        $region53: #{tpu_custom_call.1} parent=39 // pred_check
          %p321 = pneg %p132
        $region54: #{tpu_custom_call.1} parent=39 // pred_check_branch
          %323 = sbr.rel (%p321) target = $region56
        $region55: #{tpu_custom_call.1} parent=39 // pred_region
          %324 = dma.done [#allocation9], 2048
        $region56: #{tpu_custom_call.1} parent=39 // pred_fallthru
          _
        // Predicated region
        $region57: #{tpu_custom_call.1} parent=39 // pred_check
          %p325 = pneg %p153
        $region58: #{tpu_custom_call.1} parent=39 // pred_check_branch
          %327 = sbr.rel (%p325) target = $region60
        $region59: #{tpu_custom_call.1} parent=39 // pred_region
          %328 = dma.done [#allocation9], 2048
        $region60: #{tpu_custom_call.1} parent=39 // pred_fallthru
          _
        %s329 = sand.u32 %s46, 1
        %s330 = scalar_lea.sflag [#allocation3], %s329
        %s331 = sand.u32 %s46, 1
        %s332 = smul.addr %s331, 128
        %s333 = scalar_lea.vmem [#allocation2], %s332
        %p334 = pneg %p59
        %p335 = pneg %p56
        %s336 = sand.u32 %s26, 1
        %s337 = scalar_lea.sflag [#allocation6], %s336
        %s338 = sand.u32 %s72, 1
        %s339 = smul.addr %s338, 384
        %s340 = scalar_lea.vmem [#allocation5], %s339
        %p341 = pneg %p85
        %p342 = pneg %p82
        %s343 = sand.u32 %s26, 1
        %s344 = scalar_lea.sflag [#allocation6], %s343
        %s345 = sand.u32 %s98, 1
        %s346 = smul.addr %s345, 128
        %s347 = scalar_lea.vmem [#allocation7], %s346
        %p348 = pneg %p111
        %p349 = pneg %p108
        %p350 = pneg %p132
        %p351 = pneg %p129
        %p352 = pneg %p153
        %p353 = pneg %p150
        %p354 = pneg %p179
        %p355 = pneg %p176
        %s356 = sand.u32 %s166, 1
        %s357 = scalar_lea.sflag [#allocation4], %s356
        %s358 = sand.u32 %s166, 1
        %s359 = smul.addr %s358, 256
        %s360 = scalar_lea.vmem [#allocation11], %s359
        %v362 = vld [vmem:[%s298] sm:$0xff]
        %v363 = vld [vmem:[%s298 + $0x8] sm:$0xff]
        %v364 = vld [vmem:[%s298 + $0x10] sm:$0xff]
        %v365 = vld [vmem:[%s298 + $0x18] sm:$0xff]
        %v366 = vld [vmem:[%s298 + $0x20] sm:$0xff]
        %v367 = vld [vmem:[%s298 + $0x28] sm:$0xff]
        %v368 = vld [vmem:[%s298 + $0x30] sm:$0xff]
        %v369 = vld [vmem:[%s298 + $0x38] sm:$0xff]
        %v370 = vld [vmem:[%s298 + $0x40] sm:$0xff]
        %v371 = vld [vmem:[%s298 + $0x48] sm:$0xff]
        %v372 = vld [vmem:[%s298 + $0x50] sm:$0xff]
        %v373 = vld [vmem:[%s298 + $0x58] sm:$0xff]
        %v374 = vld [vmem:[%s298 + $0x60] sm:$0xff]
        %v375 = vld [vmem:[%s298 + $0x68] sm:$0xff]
        %v376 = vld [vmem:[%s298 + $0x70] sm:$0xff]
        %v377 = vld [vmem:[%s298 + $0x78] sm:$0xff]
        %v378 = vld [vmem:[%s307] sm:$0xff]
        %v379 = vld [vmem:[%s307 + $0x8] sm:$0xf]
        %v380 = vld [vmem:[%s307 + $0xc] sm:$0xff]
        %v381 = vld [vmem:[%s307 + $0x14] sm:$0xf]
        %v382 = vld [vmem:[%s307 + $0x18] sm:$0xff]
        %v383 = vld [vmem:[%s307 + $0x20] sm:$0xf]
        %v384 = vld [vmem:[%s307 + $0x24] sm:$0xff]
        %v385 = vld [vmem:[%s307 + $0x2c] sm:$0xf]
        %v386 = vld [vmem:[%s307 + $0x30] sm:$0xff]
        %v387 = vld [vmem:[%s307 + $0x38] sm:$0xf]
        %v388 = vld [vmem:[%s307 + $0x3c] sm:$0xff]
        %v389 = vld [vmem:[%s307 + $0x44] sm:$0xf]
        %v390 = vld [vmem:[%s307 + $0x48] sm:$0xff]
        %v391 = vld [vmem:[%s307 + $0x50] sm:$0xf]
        %v392 = vld [vmem:[%s307 + $0x54] sm:$0xff]
        %v393 = vld [vmem:[%s307 + $0x5c] sm:$0xf]
        %v394 = vld [vmem:[%s307 + $0x60] sm:$0xff]
        %v395 = vld [vmem:[%s307 + $0x68] sm:$0xf]
        %v396 = vld [vmem:[%s307 + $0x6c] sm:$0xff]
        %v397 = vld [vmem:[%s307 + $0x74] sm:$0xf]
        %v398 = vld [vmem:[%s307 + $0x78] sm:$0xff]
        %v399 = vld [vmem:[%s307 + $0x80] sm:$0xf]
        %v400 = vld [vmem:[%s307 + $0x84] sm:$0xff]
        %v401 = vld [vmem:[%s307 + $0x8c] sm:$0xf]
        %v402 = vld [vmem:[%s307 + $0x90] sm:$0xff]
        %v403 = vld [vmem:[%s307 + $0x98] sm:$0xf]
        %v404 = vld [vmem:[%s307 + $0x9c] sm:$0xff]
        %v405 = vld [vmem:[%s307 + $0xa4] sm:$0xf]
        %v406 = vld [vmem:[%s307 + $0xa8] sm:$0xff]
        %v407 = vld [vmem:[%s307 + $0xb0] sm:$0xf]
        %v408 = vld [vmem:[%s307 + $0xb4] sm:$0xff]
        %v409 = vld [vmem:[%s307 + $0xbc] sm:$0xf]
        %v410 = vld [vmem:[%s307 + $0xc0] sm:$0xff]
        %v411 = vld [vmem:[%s307 + $0xc8] sm:$0xf]
        %v412 = vld [vmem:[%s307 + $0xcc] sm:$0xff]
        %v413 = vld [vmem:[%s307 + $0xd4] sm:$0xf]
        %v414 = vld [vmem:[%s307 + $0xd8] sm:$0xff]
        %v415 = vld [vmem:[%s307 + $0xe0] sm:$0xf]
        %v416 = vld [vmem:[%s307 + $0xe4] sm:$0xff]
        %v417 = vld [vmem:[%s307 + $0xec] sm:$0xf]
        %v418 = vld [vmem:[%s307 + $0xf0] sm:$0xff]
        %v419 = vld [vmem:[%s307 + $0xf8] sm:$0xf]
        %v420 = vld [vmem:[%s307 + $0xfc] sm:$0xff]
        %v421 = vld [vmem:[%s307 + $0x104] sm:$0xf]
        %v422 = vld [vmem:[%s307 + $0x108] sm:$0xff]
        %v423 = vld [vmem:[%s307 + $0x110] sm:$0xf]
        %v424 = vld [vmem:[%s307 + $0x114] sm:$0xff]
        %v425 = vld [vmem:[%s307 + $0x11c] sm:$0xf]
        %v426 = vld [vmem:[%s307 + $0x120] sm:$0xff]
        %v427 = vld [vmem:[%s307 + $0x128] sm:$0xf]
        %v428 = vld [vmem:[%s307 + $0x12c] sm:$0xff]
        %v429 = vld [vmem:[%s307 + $0x134] sm:$0xf]
        %v430 = vld [vmem:[%s307 + $0x138] sm:$0xff]
        %v431 = vld [vmem:[%s307 + $0x140] sm:$0xf]
        %v432 = vld [vmem:[%s307 + $0x144] sm:$0xff]
        %v433 = vld [vmem:[%s307 + $0x14c] sm:$0xf]
        %v434 = vld [vmem:[%s307 + $0x150] sm:$0xff]
        %v435 = vld [vmem:[%s307 + $0x158] sm:$0xf]
        %v436 = vld [vmem:[%s307 + $0x15c] sm:$0xff]
        %v437 = vld [vmem:[%s307 + $0x164] sm:$0xf]
        %v438 = vld [vmem:[%s307 + $0x168] sm:$0xff]
        %v439 = vld [vmem:[%s307 + $0x170] sm:$0xf]
        %v440 = vld [vmem:[%s307 + $0x174] sm:$0xff]
        %v441 = vld [vmem:[%s307 + $0x17c] sm:$0xf]
        %v458 = vunpack.c.l.b16 %v362
        %v459 = vunpack.c.h.b16 %v362
        %v460 = vunpack.c.l.b16 %v363
        %v461 = vunpack.c.h.b16 %v363
        %v462 = vunpack.c.l.b16 %v364
        %v463 = vunpack.c.h.b16 %v364
        %v464 = vunpack.c.l.b16 %v365
        %v465 = vunpack.c.h.b16 %v365
        %v466 = vunpack.c.l.b16 %v366
        %v467 = vunpack.c.h.b16 %v366
        %v468 = vunpack.c.l.b16 %v367
        %v469 = vunpack.c.h.b16 %v367
        %v470 = vunpack.c.l.b16 %v368
        %v471 = vunpack.c.h.b16 %v368
        %v472 = vunpack.c.l.b16 %v369
        %v473 = vunpack.c.h.b16 %v369
        %v474 = vunpack.c.l.b16 %v370
        %v475 = vunpack.c.h.b16 %v370
        %v476 = vunpack.c.l.b16 %v371
        %v477 = vunpack.c.h.b16 %v371
        %v478 = vunpack.c.l.b16 %v372
        %v479 = vunpack.c.h.b16 %v372
        %v480 = vunpack.c.l.b16 %v373
        %v481 = vunpack.c.h.b16 %v373
        %v482 = vunpack.c.l.b16 %v374
        %v483 = vunpack.c.h.b16 %v374
        %v484 = vunpack.c.l.b16 %v375
        %v485 = vunpack.c.h.b16 %v375
        %v486 = vunpack.c.l.b16 %v376
        %v487 = vunpack.c.h.b16 %v376
        %v488 = vunpack.c.l.b16 %v377
        %v489 = vunpack.c.h.b16 %v377
        %v490 = vpack.c.b16 %v460, %v458
        %v491 = vpack.c.b16 %v461, %v459
        %v492 = vpack.c.b16 %v464, %v462
        %v493 = vpack.c.b16 %v465, %v463
        %v494 = vpack.c.b16 %v468, %v466
        %v495 = vpack.c.b16 %v469, %v467
        %v496 = vpack.c.b16 %v472, %v470
        %v497 = vpack.c.b16 %v473, %v471
        %v498 = vpack.c.b16 %v476, %v474
        %v499 = vpack.c.b16 %v477, %v475
        %v500 = vpack.c.b16 %v480, %v478
        %v501 = vpack.c.b16 %v481, %v479
        %v502 = vpack.c.b16 %v484, %v482
        %v503 = vpack.c.b16 %v485, %v483
        %v504 = vpack.c.b16 %v488, %v486
        %v505 = vpack.c.b16 %v489, %v487
        %v586 = vunpack.c.l.b16 %v378
        %v587 = vunpack.c.h.b16 %v378
        %v588 = vunpack.c.l.b16 %v379
        %v589 = vunpack.c.l.b16 %v380
        %v590 = vunpack.c.h.b16 %v380
        %v591 = vunpack.c.l.b16 %v381
        %v592 = vunpack.c.l.b16 %v382
        %v593 = vunpack.c.h.b16 %v382
        %v594 = vunpack.c.l.b16 %v383
        %v595 = vunpack.c.l.b16 %v384
        %v596 = vunpack.c.h.b16 %v384
        %v597 = vunpack.c.l.b16 %v385
        %v598 = vunpack.c.l.b16 %v386
        %v599 = vunpack.c.h.b16 %v386
        %v600 = vunpack.c.l.b16 %v387
        %v601 = vunpack.c.l.b16 %v388
        %v602 = vunpack.c.h.b16 %v388
        %v603 = vunpack.c.l.b16 %v389
        %v604 = vunpack.c.l.b16 %v390
        %v605 = vunpack.c.h.b16 %v390
        %v606 = vunpack.c.l.b16 %v391
        %v607 = vunpack.c.l.b16 %v392
        %v608 = vunpack.c.h.b16 %v392
        %v609 = vunpack.c.l.b16 %v393
        %v610 = vunpack.c.l.b16 %v394
        %v611 = vunpack.c.h.b16 %v394
        %v612 = vunpack.c.l.b16 %v395
        %v613 = vunpack.c.l.b16 %v396
        %v614 = vunpack.c.h.b16 %v396
        %v615 = vunpack.c.l.b16 %v397
        %v616 = vunpack.c.l.b16 %v398
        %v617 = vunpack.c.h.b16 %v398
        %v618 = vunpack.c.l.b16 %v399
        %v619 = vunpack.c.l.b16 %v400
        %v620 = vunpack.c.h.b16 %v400
        %v621 = vunpack.c.l.b16 %v401
        %v622 = vunpack.c.l.b16 %v402
        %v623 = vunpack.c.h.b16 %v402
        %v624 = vunpack.c.l.b16 %v403
        %v625 = vunpack.c.l.b16 %v404
        %v626 = vunpack.c.h.b16 %v404
        %v627 = vunpack.c.l.b16 %v405
        %v628 = vunpack.c.l.b16 %v406
        %v629 = vunpack.c.h.b16 %v406
        %v630 = vunpack.c.l.b16 %v407
        %v631 = vunpack.c.l.b16 %v408
        %v632 = vunpack.c.h.b16 %v408
        %v633 = vunpack.c.l.b16 %v409
        %v634 = vunpack.c.l.b16 %v410
        %v635 = vunpack.c.h.b16 %v410
        %v636 = vunpack.c.l.b16 %v411
        %v637 = vunpack.c.l.b16 %v412
        %v638 = vunpack.c.h.b16 %v412
        %v639 = vunpack.c.l.b16 %v413
        %v640 = vunpack.c.l.b16 %v414
        %v641 = vunpack.c.h.b16 %v414
        %v642 = vunpack.c.l.b16 %v415
        %v643 = vunpack.c.l.b16 %v416
        %v644 = vunpack.c.h.b16 %v416
        %v645 = vunpack.c.l.b16 %v417
        %v646 = vunpack.c.l.b16 %v418
        %v647 = vunpack.c.h.b16 %v418
        %v648 = vunpack.c.l.b16 %v419
        %v649 = vunpack.c.l.b16 %v420
        %v650 = vunpack.c.h.b16 %v420
        %v651 = vunpack.c.l.b16 %v421
        %v652 = vunpack.c.l.b16 %v422
        %v653 = vunpack.c.h.b16 %v422
        %v654 = vunpack.c.l.b16 %v423
        %v655 = vunpack.c.l.b16 %v424
        %v656 = vunpack.c.h.b16 %v424
        %v657 = vunpack.c.l.b16 %v425
        %v658 = vunpack.c.l.b16 %v426
        %v659 = vunpack.c.h.b16 %v426
        %v660 = vunpack.c.l.b16 %v427
        %v661 = vunpack.c.l.b16 %v428
        %v662 = vunpack.c.h.b16 %v428
        %v663 = vunpack.c.l.b16 %v429
        %v664 = vunpack.c.l.b16 %v430
        %v665 = vunpack.c.h.b16 %v430
        %v666 = vunpack.c.l.b16 %v431
        %v667 = vunpack.c.l.b16 %v432
        %v668 = vunpack.c.h.b16 %v432
        %v669 = vunpack.c.l.b16 %v433
        %v670 = vunpack.c.l.b16 %v434
        %v671 = vunpack.c.h.b16 %v434
        %v672 = vunpack.c.l.b16 %v435
        %v673 = vunpack.c.l.b16 %v436
        %v674 = vunpack.c.h.b16 %v436
        %v675 = vunpack.c.l.b16 %v437
        %v676 = vunpack.c.l.b16 %v438
        %v677 = vunpack.c.h.b16 %v438
        %v678 = vunpack.c.l.b16 %v439
        %v679 = vunpack.c.l.b16 %v440
        %v680 = vunpack.c.h.b16 %v440
        %v681 = vunpack.c.l.b16 %v441
        %v682 = vpack.c.b16 %v589, %v586
        %v683 = vpack.c.b16 %v590, %v587
        %v684 = vpack.c.b16 %v591, %v588
        %v685 = vpack.c.b16 %v595, %v592
        %v686 = vpack.c.b16 %v596, %v593
        %v687 = vpack.c.b16 %v597, %v594
        %v688 = vpack.c.b16 %v601, %v598
        %v689 = vpack.c.b16 %v602, %v599
        %v690 = vpack.c.b16 %v603, %v600
        %v691 = vpack.c.b16 %v607, %v604
        %v692 = vpack.c.b16 %v608, %v605
        %v693 = vpack.c.b16 %v609, %v606
        %v694 = vpack.c.b16 %v613, %v610
        %v695 = vpack.c.b16 %v614, %v611
        %v696 = vpack.c.b16 %v615, %v612
        %v697 = vpack.c.b16 %v619, %v616
        %v698 = vpack.c.b16 %v620, %v617
        %v699 = vpack.c.b16 %v621, %v618
        %v700 = vpack.c.b16 %v625, %v622
        %v701 = vpack.c.b16 %v626, %v623
        %v702 = vpack.c.b16 %v627, %v624
        %v703 = vpack.c.b16 %v631, %v628
        %v704 = vpack.c.b16 %v632, %v629
        %v705 = vpack.c.b16 %v633, %v630
        %v706 = vpack.c.b16 %v637, %v634
        %v707 = vpack.c.b16 %v638, %v635
        %v708 = vpack.c.b16 %v639, %v636
        %v709 = vpack.c.b16 %v643, %v640
        %v710 = vpack.c.b16 %v644, %v641
        %v711 = vpack.c.b16 %v645, %v642
        %v712 = vpack.c.b16 %v649, %v646
        %v713 = vpack.c.b16 %v650, %v647
        %v714 = vpack.c.b16 %v651, %v648
        %v715 = vpack.c.b16 %v655, %v652
        %v716 = vpack.c.b16 %v656, %v653
        %v717 = vpack.c.b16 %v657, %v654
        %v718 = vpack.c.b16 %v661, %v658
        %v719 = vpack.c.b16 %v662, %v659
        %v720 = vpack.c.b16 %v663, %v660
        %v721 = vpack.c.b16 %v667, %v664
        %v722 = vpack.c.b16 %v668, %v665
        %v723 = vpack.c.b16 %v669, %v666
        %v724 = vpack.c.b16 %v673, %v670
        %v725 = vpack.c.b16 %v674, %v671
        %v726 = vpack.c.b16 %v675, %v672
        %v727 = vpack.c.b16 %v679, %v676
        %v728 = vpack.c.b16 %v680, %v677
        %v729 = vpack.c.b16 %v681, %v678
        %778 = vmatprep.subr.bf16.mxu0 %v683
        %779 = vmatpush1.bf16.msra.mxu0 %v682
        %780 = vmatprep.subr.bf16.mxu0 %v686
        %781 = vmatpush1.bf16.msra.mxu0 %v685
        %782 = vmatprep.subr.bf16.mxu0 %v689
        %783 = vmatpush1.bf16.msra.mxu0 %v688
        %784 = vmatprep.subr.bf16.mxu0 %v692
        %785 = vmatpush1.bf16.msra.mxu0 %v691
        %786 = vmatprep.subr.bf16.mxu0 %v695
        %787 = vmatpush1.bf16.msra.mxu0 %v694
        %788 = vmatprep.subr.bf16.mxu0 %v698
        %789 = vmatpush1.bf16.msra.mxu0 %v697
        %790 = vmatprep.subr.bf16.mxu0 %v701
        %791 = vmatpush1.bf16.msra.mxu0 %v700
        %792 = vmatprep.subr.bf16.mxu0 %v704
        %793 = vmatpush1.bf16.msra.mxu0 %v703
        %794 = vmatprep.subr.bf16.mxu0 %v707
        %795 = vmatpush1.bf16.msra.mxu0 %v706
        %796 = vmatprep.subr.bf16.mxu0 %v710
        %797 = vmatpush1.bf16.msra.mxu0 %v709
        %798 = vmatprep.subr.bf16.mxu0 %v713
        %799 = vmatpush1.bf16.msra.mxu0 %v712
        %800 = vmatprep.subr.bf16.mxu0 %v716
        %801 = vmatpush1.bf16.msra.mxu0 %v715
        %802 = vmatprep.subr.bf16.mxu0 %v719
        %803 = vmatpush1.bf16.msra.mxu0 %v718
        %804 = vmatprep.subr.bf16.mxu0 %v722
        %805 = vmatpush1.bf16.msra.mxu0 %v721
        %806 = vmatprep.subr.bf16.mxu0 %v725
        %807 = vmatpush1.bf16.msra.mxu0 %v724
        %808 = vmatprep.subr.bf16.mxu0 %v728
        %809 = vmatpush1.bf16.msra.mxu0 %v727
        %810 = vmatprep.mubr.bf16.mxu0 %v491
        %811 = vmatmul.mubr.bf16.gmra.mrb[0].mxu0 %v490
        %v812 = vpop.f32.mrb[0].mxu0
        %v813 = vadd.f32 0.0, %v812
        %v814 = vpop.f32.mrb[0].mxu0
        %v815 = vadd.f32 0.0, %v814
        %v816 = vpop.f32.mrb[0].mxu0
        %v817 = vadd.f32 0.0, %v816
        %v818 = vpop.f32.mrb[0].mxu0
        %v819 = vadd.f32 0.0, %v818
        %820 = vmatprep.mubr.bf16.mxu0 %v493
        %821 = vmatmul.mubr.bf16.gmra.mrb[0].mxu0 %v492
        %v822 = vpop.f32.mrb[0].mxu0
        %v823 = vadd.f32 0.0, %v822
        %v824 = vpop.f32.mrb[0].mxu0
        %v825 = vadd.f32 0.0, %v824
        %v826 = vpop.f32.mrb[0].mxu0
        %v827 = vadd.f32 0.0, %v826
        %v828 = vpop.f32.mrb[0].mxu0
        %v829 = vadd.f32 0.0, %v828
        %830 = vmatprep.mubr.bf16.mxu0 %v495
        %831 = vmatmul.mubr.bf16.gmra.mrb[0].mxu0 %v494
        %v832 = vpop.f32.mrb[0].mxu0
        %v833 = vadd.f32 0.0, %v832
        %v834 = vpop.f32.mrb[0].mxu0
        %v835 = vadd.f32 0.0, %v834
        %v836 = vpop.f32.mrb[0].mxu0
        %v837 = vadd.f32 0.0, %v836
        %v838 = vpop.f32.mrb[0].mxu0
        %v839 = vadd.f32 0.0, %v838
        %840 = vmatprep.mubr.bf16.mxu0 %v497
        %841 = vmatmul.mubr.bf16.gmra.mrb[0].mxu0 %v496
        %v842 = vpop.f32.mrb[0].mxu0
        %v843 = vadd.f32 0.0, %v842
        %v844 = vpop.f32.mrb[0].mxu0
        %v845 = vadd.f32 0.0, %v844
        %v846 = vpop.f32.mrb[0].mxu0
        %v847 = vadd.f32 0.0, %v846
        %v848 = vpop.f32.mrb[0].mxu0
        %v849 = vadd.f32 0.0, %v848
        %850 = vmatprep.mubr.bf16.mxu0 %v499
        %851 = vmatmul.mubr.bf16.gmra.mrb[0].mxu0 %v498
        %v852 = vpop.f32.mrb[0].mxu0
        %v853 = vadd.f32 0.0, %v852
        %v854 = vpop.f32.mrb[0].mxu0
        %v855 = vadd.f32 0.0, %v854
        %v856 = vpop.f32.mrb[0].mxu0
        %v857 = vadd.f32 0.0, %v856
        %v858 = vpop.f32.mrb[0].mxu0
        %v859 = vadd.f32 0.0, %v858
        %860 = vmatprep.mubr.bf16.mxu0 %v501
        %861 = vmatmul.mubr.bf16.gmra.mrb[0].mxu0 %v500
        %v862 = vpop.f32.mrb[0].mxu0
        %v863 = vadd.f32 0.0, %v862
        %v864 = vpop.f32.mrb[0].mxu0
        %v865 = vadd.f32 0.0, %v864
        %v866 = vpop.f32.mrb[0].mxu0
        %v867 = vadd.f32 0.0, %v866
        %v868 = vpop.f32.mrb[0].mxu0
        %v869 = vadd.f32 0.0, %v868
        %870 = vmatprep.mubr.bf16.mxu0 %v503
        %871 = vmatmul.mubr.bf16.gmra.mrb[0].mxu0 %v502
        %v872 = vpop.f32.mrb[0].mxu0
        %v873 = vadd.f32 0.0, %v872
        %v874 = vpop.f32.mrb[0].mxu0
        %v875 = vadd.f32 0.0, %v874
        %v876 = vpop.f32.mrb[0].mxu0
        %v877 = vadd.f32 0.0, %v876
        %v878 = vpop.f32.mrb[0].mxu0
        %v879 = vadd.f32 0.0, %v878
        %880 = vmatprep.mubr.bf16.mxu0 %v505
        %881 = vmatmul.mubr.bf16.gmra.mrb[0].mxu0 %v504
        %v882 = vpop.f32.mrb[0].mxu0
        %v883 = vadd.f32 0.0, %v882
        %v884 = vpop.f32.mrb[0].mxu0
        %v885 = vadd.f32 0.0, %v884
        %v886 = vpop.f32.mrb[0].mxu0
        %v887 = vadd.f32 0.0, %v886
        %v888 = vpop.f32.mrb[0].mxu0
        %v889 = vadd.f32 0.0, %v888
        %890 = vdwg.mxu0
        %891 = vmatprep.subr.bf16.mxu0 0
        %892 = vmatpush1.bf16.msra.mxu0 %v684
        %893 = vmatprep.subr.bf16.mxu0 0
        %894 = vmatpush1.bf16.msra.mxu0 %v687
        %895 = vmatprep.subr.bf16.mxu0 0
        %896 = vmatpush1.bf16.msra.mxu0 %v690
        %897 = vmatprep.subr.bf16.mxu0 0
        %898 = vmatpush1.bf16.msra.mxu0 %v693
        %899 = vmatprep.subr.bf16.mxu0 0
        %900 = vmatpush1.bf16.msra.mxu0 %v696
        %901 = vmatprep.subr.bf16.mxu0 0
        %902 = vmatpush1.bf16.msra.mxu0 %v699
        %903 = vmatprep.subr.bf16.mxu0 0
        %904 = vmatpush1.bf16.msra.mxu0 %v702
        %905 = vmatprep.subr.bf16.mxu0 0
        %906 = vmatpush1.bf16.msra.mxu0 %v705
        %907 = vmatprep.subr.bf16.mxu0 0
        %908 = vmatpush1.bf16.msra.mxu0 %v708
        %909 = vmatprep.subr.bf16.mxu0 0
        %910 = vmatpush1.bf16.msra.mxu0 %v711
        %911 = vmatprep.subr.bf16.mxu0 0
        %912 = vmatpush1.bf16.msra.mxu0 %v714
        %913 = vmatprep.subr.bf16.mxu0 0
        %914 = vmatpush1.bf16.msra.mxu0 %v717
        %915 = vmatprep.subr.bf16.mxu0 0
        %916 = vmatpush1.bf16.msra.mxu0 %v720
        %917 = vmatprep.subr.bf16.mxu0 0
        %918 = vmatpush1.bf16.msra.mxu0 %v723
        %919 = vmatprep.subr.bf16.mxu0 0
        %920 = vmatpush1.bf16.msra.mxu0 %v726
        %921 = vmatprep.subr.bf16.mxu0 0
        %922 = vmatpush1.bf16.msra.mxu0 %v729
        %923 = vmatprep.mubr.bf16.mxu0 %v491
        %924 = vmatmul.mubr.bf16.gmra.mrb[0].mxu0 %v490
        %v925 = vpop.f32.mrb[0].mxu0
        %v926 = vadd.f32 0.0, %v925
        %v927 = vpop.f32.mrb[0].mxu0
        %v928 = vpop.f32.mrb[0].mxu0
        %v929 = vadd.f32 0.0, %v928
        %v930 = vpop.f32.mrb[0].mxu0
        %931 = vmatprep.mubr.bf16.mxu0 %v493
        %932 = vmatmul.mubr.bf16.gmra.mrb[0].mxu0 %v492
        %v933 = vpop.f32.mrb[0].mxu0
        %v934 = vadd.f32 0.0, %v933
        %v935 = vpop.f32.mrb[0].mxu0
        %v936 = vpop.f32.mrb[0].mxu0
        %v937 = vadd.f32 0.0, %v936
        %v938 = vpop.f32.mrb[0].mxu0
        %939 = vmatprep.mubr.bf16.mxu0 %v495
        %940 = vmatmul.mubr.bf16.gmra.mrb[0].mxu0 %v494
        %v941 = vpop.f32.mrb[0].mxu0
        %v942 = vadd.f32 0.0, %v941
        %v943 = vpop.f32.mrb[0].mxu0
        %v944 = vpop.f32.mrb[0].mxu0
        %v945 = vadd.f32 0.0, %v944
        %v946 = vpop.f32.mrb[0].mxu0
        %947 = vmatprep.mubr.bf16.mxu0 %v497
        %948 = vmatmul.mubr.bf16.gmra.mrb[0].mxu0 %v496
        %v949 = vpop.f32.mrb[0].mxu0
        %v950 = vadd.f32 0.0, %v949
        %v951 = vpop.f32.mrb[0].mxu0
        %v952 = vpop.f32.mrb[0].mxu0
        %v953 = vadd.f32 0.0, %v952
        %v954 = vpop.f32.mrb[0].mxu0
        %955 = vmatprep.mubr.bf16.mxu0 %v499
        %956 = vmatmul.mubr.bf16.gmra.mrb[0].mxu0 %v498
        %v957 = vpop.f32.mrb[0].mxu0
        %v958 = vadd.f32 0.0, %v957
        %v959 = vpop.f32.mrb[0].mxu0
        %v960 = vpop.f32.mrb[0].mxu0
        %v961 = vadd.f32 0.0, %v960
        %v962 = vpop.f32.mrb[0].mxu0
        %963 = vmatprep.mubr.bf16.mxu0 %v501
        %964 = vmatmul.mubr.bf16.gmra.mrb[0].mxu0 %v500
        %v965 = vpop.f32.mrb[0].mxu0
        %v966 = vadd.f32 0.0, %v965
        %v967 = vpop.f32.mrb[0].mxu0
        %v968 = vpop.f32.mrb[0].mxu0
        %v969 = vadd.f32 0.0, %v968
        %v970 = vpop.f32.mrb[0].mxu0
        %971 = vmatprep.mubr.bf16.mxu0 %v503
        %972 = vmatmul.mubr.bf16.gmra.mrb[0].mxu0 %v502
        %v973 = vpop.f32.mrb[0].mxu0
        %v974 = vadd.f32 0.0, %v973
        %v975 = vpop.f32.mrb[0].mxu0
        %v976 = vpop.f32.mrb[0].mxu0
        %v977 = vadd.f32 0.0, %v976
        %v978 = vpop.f32.mrb[0].mxu0
        %979 = vmatprep.mubr.bf16.mxu0 %v505
        %980 = vmatmul.mubr.bf16.gmra.mrb[0].mxu0 %v504
        %v981 = vpop.f32.mrb[0].mxu0
        %v982 = vadd.f32 0.0, %v981
        %v983 = vpop.f32.mrb[0].mxu0
        %v984 = vpop.f32.mrb[0].mxu0
        %v985 = vadd.f32 0.0, %v984
        %v986 = vpop.f32.mrb[0].mxu0
        %987 = vdwg.mxu0
        %v988 = vld [vmem:[#allocation8] sm:$0xff]
        %v989 = vld [vmem:[#allocation8 + $0x8] sm:$0xff]
        %v990 = vld [vmem:[#allocation8 + $0x10] sm:$0xff]
        %v991 = vld [vmem:[#allocation8 + $0x18] sm:$0xff]
        %v992 = vld [vmem:[#allocation8 + $0x20] sm:$0xff]
        %v993 = vld [vmem:[#allocation8 + $0x28] sm:$0xff]
        %v994 = vld [vmem:[#allocation8 + $0x30] sm:$0xff]
        %v995 = vld [vmem:[#allocation8 + $0x38] sm:$0xff]
        %v996 = vld [vmem:[#allocation8 + $0x40] sm:$0xff]
        %v997 = vld [vmem:[#allocation8 + $0x48] sm:$0xff]
        %v998 = vld [vmem:[#allocation8 + $0x50] sm:$0xff]
        %v999 = vld [vmem:[#allocation8 + $0x58] sm:$0xff]
        %v1000 = vld [vmem:[#allocation8 + $0x60] sm:$0xff]
        %v1001 = vld [vmem:[#allocation8 + $0x68] sm:$0xff]
        %v1002 = vld [vmem:[#allocation8 + $0x70] sm:$0xff]
        %v1003 = vld [vmem:[#allocation8 + $0x78] sm:$0xff]
        %v1004 = vld [vmem:[#allocation10] sm:$0xff]
        %v1005 = vld [vmem:[#allocation10 + $0x8] sm:$0xff]
        %v1006 = vld [vmem:[#allocation10 + $0x10] sm:$0xff]
        %v1007 = vld [vmem:[#allocation10 + $0x18] sm:$0xff]
        %v1008 = vld [vmem:[#allocation10 + $0x20] sm:$0xff]
        %v1009 = vld [vmem:[#allocation10 + $0x28] sm:$0xff]
        %v1010 = vld [vmem:[#allocation10 + $0x30] sm:$0xff]
        %v1011 = vld [vmem:[#allocation10 + $0x38] sm:$0xff]
        %v1012 = vld [vmem:[#allocation10 + $0x40] sm:$0xff]
        %v1013 = vld [vmem:[#allocation10 + $0x48] sm:$0xff]
        %v1014 = vld [vmem:[#allocation10 + $0x50] sm:$0xff]
        %v1015 = vld [vmem:[#allocation10 + $0x58] sm:$0xff]
        %v1016 = vld [vmem:[#allocation10 + $0x60] sm:$0xff]
        %v1017 = vld [vmem:[#allocation10 + $0x68] sm:$0xff]
        %v1018 = vld [vmem:[#allocation10 + $0x70] sm:$0xff]
        %v1019 = vld [vmem:[#allocation10 + $0x78] sm:$0xff]
        %v1020 = vmul.f32 %v813, %v988
        %v1021 = vmul.f32 %v817, %v989
        %v1022 = vmul.f32 %v823, %v990
        %v1023 = vmul.f32 %v827, %v991
        %v1024 = vmul.f32 %v833, %v992
        %v1025 = vmul.f32 %v837, %v993
        %v1026 = vmul.f32 %v843, %v994
        %v1027 = vmul.f32 %v847, %v995
        %v1028 = vmul.f32 %v853, %v996
        %v1029 = vmul.f32 %v857, %v997
        %v1030 = vmul.f32 %v863, %v998
        %v1031 = vmul.f32 %v867, %v999
        %v1032 = vmul.f32 %v873, %v1000
        %v1033 = vmul.f32 %v877, %v1001
        %v1034 = vmul.f32 %v883, %v1002
        %v1035 = vmul.f32 %v887, %v1003
        %1036 = vrot.lane.b32.xlu0 %v813, 64
        %v1037 = vpop.permute.xlu0 %1036
        %1038 = vrot.lane.b32.xlu0 %v817, 64
        %v1039 = vpop.permute.xlu0 %1038
        %1040 = vrot.lane.b32.xlu0 %v823, 64
        %v1041 = vpop.permute.xlu0 %1040
        %1042 = vrot.lane.b32.xlu0 %v827, 64
        %v1043 = vpop.permute.xlu0 %1042
        %1044 = vrot.lane.b32.xlu0 %v833, 64
        %v1045 = vpop.permute.xlu0 %1044
        %1046 = vrot.lane.b32.xlu0 %v837, 64
        %v1047 = vpop.permute.xlu0 %1046
        %1048 = vrot.lane.b32.xlu0 %v843, 64
        %v1049 = vpop.permute.xlu0 %1048
        %1050 = vrot.lane.b32.xlu0 %v847, 64
        %v1051 = vpop.permute.xlu0 %1050
        %1052 = vrot.lane.b32.xlu0 %v853, 64
        %v1053 = vpop.permute.xlu0 %1052
        %1054 = vrot.lane.b32.xlu0 %v857, 64
        %v1055 = vpop.permute.xlu0 %1054
        %1056 = vrot.lane.b32.xlu0 %v863, 64
        %v1057 = vpop.permute.xlu0 %1056
        %1058 = vrot.lane.b32.xlu0 %v867, 64
        %v1059 = vpop.permute.xlu0 %1058
        %1060 = vrot.lane.b32.xlu0 %v873, 64
        %v1061 = vpop.permute.xlu0 %1060
        %1062 = vrot.lane.b32.xlu0 %v877, 64
        %v1063 = vpop.permute.xlu0 %1062
        %1064 = vrot.lane.b32.xlu0 %v883, 64
        %v1065 = vpop.permute.xlu0 %1064
        %1066 = vrot.lane.b32.xlu0 %v887, 64
        %v1067 = vpop.permute.xlu0 %1066
        %v1068 = vmul.f32 %v1037, %v1004
        %v1069 = vmul.f32 %v1039, %v1005
        %v1070 = vmul.f32 %v1041, %v1006
        %v1071 = vmul.f32 %v1043, %v1007
        %v1072 = vmul.f32 %v1045, %v1008
        %v1073 = vmul.f32 %v1047, %v1009
        %v1074 = vmul.f32 %v1049, %v1010
        %v1075 = vmul.f32 %v1051, %v1011
        %v1076 = vmul.f32 %v1053, %v1012
        %v1077 = vmul.f32 %v1055, %v1013
        %v1078 = vmul.f32 %v1057, %v1014
        %v1079 = vmul.f32 %v1059, %v1015
        %v1080 = vmul.f32 %v1061, %v1016
        %v1081 = vmul.f32 %v1063, %v1017
        %v1082 = vmul.f32 %v1065, %v1018
        %v1083 = vmul.f32 %v1067, %v1019
        %v1084 = vadd.f32 %v1020, %v1068
        %v1085 = vadd.f32 %v1021, %v1069
        %v1086 = vadd.f32 %v1022, %v1070
        %v1087 = vadd.f32 %v1023, %v1071
        %v1088 = vadd.f32 %v1024, %v1072
        %v1089 = vadd.f32 %v1025, %v1073
        %v1090 = vadd.f32 %v1026, %v1074
        %v1091 = vadd.f32 %v1027, %v1075
        %v1092 = vadd.f32 %v1028, %v1076
        %v1093 = vadd.f32 %v1029, %v1077
        %v1094 = vadd.f32 %v1030, %v1078
        %v1095 = vadd.f32 %v1031, %v1079
        %v1096 = vadd.f32 %v1032, %v1080
        %v1097 = vadd.f32 %v1033, %v1081
        %v1098 = vadd.f32 %v1034, %v1082
        %v1099 = vadd.f32 %v1035, %v1083
        %v1100 = vmul.f32 %v815, %v988
        %v1101 = vmul.f32 %v819, %v989
        %v1102 = vmul.f32 %v825, %v990
        %v1103 = vmul.f32 %v829, %v991
        %v1104 = vmul.f32 %v835, %v992
        %v1105 = vmul.f32 %v839, %v993
        %v1106 = vmul.f32 %v845, %v994
        %v1107 = vmul.f32 %v849, %v995
        %v1108 = vmul.f32 %v855, %v996
        %v1109 = vmul.f32 %v859, %v997
        %v1110 = vmul.f32 %v865, %v998
        %v1111 = vmul.f32 %v869, %v999
        %v1112 = vmul.f32 %v875, %v1000
        %v1113 = vmul.f32 %v879, %v1001
        %v1114 = vmul.f32 %v885, %v1002
        %v1115 = vmul.f32 %v889, %v1003
        %1116 = vrot.lane.b32.xlu0 %v815, 64
        %v1117 = vpop.permute.xlu0 %1116
        %1118 = vrot.lane.b32.xlu0 %v819, 64
        %v1119 = vpop.permute.xlu0 %1118
        %1120 = vrot.lane.b32.xlu0 %v825, 64
        %v1121 = vpop.permute.xlu0 %1120
        %1122 = vrot.lane.b32.xlu0 %v829, 64
        %v1123 = vpop.permute.xlu0 %1122
        %1124 = vrot.lane.b32.xlu0 %v835, 64
        %v1125 = vpop.permute.xlu0 %1124
        %1126 = vrot.lane.b32.xlu0 %v839, 64
        %v1127 = vpop.permute.xlu0 %1126
        %1128 = vrot.lane.b32.xlu0 %v845, 64
        %v1129 = vpop.permute.xlu0 %1128
        %1130 = vrot.lane.b32.xlu0 %v849, 64
        %v1131 = vpop.permute.xlu0 %1130
        %1132 = vrot.lane.b32.xlu0 %v855, 64
        %v1133 = vpop.permute.xlu0 %1132
        %1134 = vrot.lane.b32.xlu0 %v859, 64
        %v1135 = vpop.permute.xlu0 %1134
        %1136 = vrot.lane.b32.xlu0 %v865, 64
        %v1137 = vpop.permute.xlu0 %1136
        %1138 = vrot.lane.b32.xlu0 %v869, 64
        %v1139 = vpop.permute.xlu0 %1138
        %1140 = vrot.lane.b32.xlu0 %v875, 64
        %v1141 = vpop.permute.xlu0 %1140
        %1142 = vrot.lane.b32.xlu0 %v879, 64
        %v1143 = vpop.permute.xlu0 %1142
        %1144 = vrot.lane.b32.xlu0 %v885, 64
        %v1145 = vpop.permute.xlu0 %1144
        %1146 = vrot.lane.b32.xlu0 %v889, 64
        %v1147 = vpop.permute.xlu0 %1146
        %v1148 = vmul.f32 %v1117, %v1004
        %v1149 = vmul.f32 %v1119, %v1005
        %v1150 = vmul.f32 %v1121, %v1006
        %v1151 = vmul.f32 %v1123, %v1007
        %v1152 = vmul.f32 %v1125, %v1008
        %v1153 = vmul.f32 %v1127, %v1009
        %v1154 = vmul.f32 %v1129, %v1010
        %v1155 = vmul.f32 %v1131, %v1011
        %v1156 = vmul.f32 %v1133, %v1012
        %v1157 = vmul.f32 %v1135, %v1013
        %v1158 = vmul.f32 %v1137, %v1014
        %v1159 = vmul.f32 %v1139, %v1015
        %v1160 = vmul.f32 %v1141, %v1016
        %v1161 = vmul.f32 %v1143, %v1017
        %v1162 = vmul.f32 %v1145, %v1018
        %v1163 = vmul.f32 %v1147, %v1019
        %v1164 = vadd.f32 %v1100, %v1148
        %v1165 = vadd.f32 %v1101, %v1149
        %v1166 = vadd.f32 %v1102, %v1150
        %v1167 = vadd.f32 %v1103, %v1151
        %v1168 = vadd.f32 %v1104, %v1152
        %v1169 = vadd.f32 %v1105, %v1153
        %v1170 = vadd.f32 %v1106, %v1154
        %v1171 = vadd.f32 %v1107, %v1155
        %v1172 = vadd.f32 %v1108, %v1156
        %v1173 = vadd.f32 %v1109, %v1157
        %v1174 = vadd.f32 %v1110, %v1158
        %v1175 = vadd.f32 %v1111, %v1159
        %v1176 = vadd.f32 %v1112, %v1160
        %v1177 = vadd.f32 %v1113, %v1161
        %v1178 = vadd.f32 %v1114, %v1162
        %v1179 = vadd.f32 %v1115, %v1163
        %v1180 = vpack.c.bf16 %v1085, %v1084
        %v1181 = vpack.c.bf16 %v1087, %v1086
        %v1182 = vpack.c.bf16 %v1089, %v1088
        %v1183 = vpack.c.bf16 %v1091, %v1090
        %v1184 = vpack.c.bf16 %v1093, %v1092
        %v1185 = vpack.c.bf16 %v1095, %v1094
        %v1186 = vpack.c.bf16 %v1097, %v1096
        %v1187 = vpack.c.bf16 %v1099, %v1098
        %v1188 = vpack.c.bf16 %v1165, %v1164
        %v1189 = vpack.c.bf16 %v1167, %v1166
        %v1190 = vpack.c.bf16 %v1169, %v1168
        %v1191 = vpack.c.bf16 %v1171, %v1170
        %v1192 = vpack.c.bf16 %v1173, %v1172
        %v1193 = vpack.c.bf16 %v1175, %v1174
        %v1194 = vpack.c.bf16 %v1177, %v1176
        %v1195 = vpack.c.bf16 %v1179, %v1178
        %1196 = vmatprep.subr.bf16.mxu0 0
        %1197 = vmatpush1.bf16.xpose.msra.mxu0 %v1188
        %1198 = vmatprep.subr.bf16.mxu0 0
        %1199 = vmatpush1.bf16.xpose.msra.mxu0 %v1189
        %1200 = vmatprep.subr.bf16.mxu0 0
        %1201 = vmatpush1.bf16.xpose.msra.mxu0 %v1190
        %1202 = vmatprep.subr.bf16.mxu0 0
        %1203 = vmatpush1.bf16.xpose.msra.mxu0 %v1191
        %1204 = vmatprep.subr.bf16.mxu0 0
        %1205 = vmatpush1.bf16.xpose.msra.mxu0 %v1192
        %1206 = vmatprep.subr.bf16.mxu0 0
        %1207 = vmatpush1.bf16.xpose.msra.mxu0 %v1193
        %1208 = vmatprep.subr.bf16.mxu0 0
        %1209 = vmatpush1.bf16.xpose.msra.mxu0 %v1194
        %1210 = vmatprep.subr.bf16.mxu0 0
        %1211 = vmatpush1.bf16.xpose.msra.mxu0 %v1195
        %1212 = vmatprep.subr.bf16.mxu0 0
        %1213 = vmatpush1.bf16.xpose.msra.mxu0 0
        %1214 = vmatprep.subr.bf16.mxu0 0
        %1215 = vmatpush1.bf16.xpose.msra.mxu0 0
        %1216 = vmatprep.subr.bf16.mxu0 0
        %1217 = vmatpush1.bf16.xpose.msra.mxu0 0
        %1218 = vmatprep.subr.bf16.mxu0 0
        %1219 = vmatpush1.bf16.xpose.msra.mxu0 0
        %1220 = vmatprep.subr.bf16.mxu0 0
        %1221 = vmatpush1.bf16.xpose.msra.mxu0 0
        %1222 = vmatprep.subr.bf16.mxu0 0
        %1223 = vmatpush1.bf16.xpose.msra.mxu0 0
        %1224 = vmatprep.subr.bf16.mxu0 0
        %1225 = vmatpush1.bf16.xpose.msra.mxu0 0
        %1226 = vmatprep.subr.bf16.mxu0 0
        %1227 = vmatpush1.bf16.xpose.msra.mxu0 0
        %1228 = vmatprep.mubr.bf16.mxu0 0
        %1229 = vmatmul.mubr.bf16.gmra.mrb[0].mxu0 %v1180
        %v1230 = vpop.f32.mrb[0].mxu0
        %v1231 = vadd.f32 0.0, %v1230
        %v1232 = vpop.f32.mrb[0].mxu0
        %v1233 = vpop.f32.mrb[0].mxu0
        %v1234 = vadd.f32 0.0, %v1233
        %v1235 = vpop.f32.mrb[0].mxu0
        %1236 = vmatprep.mubr.bf16.mxu0 0
        %1237 = vmatmul.mubr.bf16.gmra.mrb[0].mxu0 %v1181
        %v1238 = vpop.f32.mrb[0].mxu0
        %v1239 = vadd.f32 0.0, %v1238
        %v1240 = vpop.f32.mrb[0].mxu0
        %v1241 = vpop.f32.mrb[0].mxu0
        %v1242 = vadd.f32 0.0, %v1241
        %v1243 = vpop.f32.mrb[0].mxu0
        %1244 = vmatprep.mubr.bf16.mxu0 0
        %1245 = vmatmul.mubr.bf16.gmra.mrb[0].mxu0 %v1182
        %v1246 = vpop.f32.mrb[0].mxu0
        %v1247 = vadd.f32 0.0, %v1246
        %v1248 = vpop.f32.mrb[0].mxu0
        %v1249 = vpop.f32.mrb[0].mxu0
        %v1250 = vadd.f32 0.0, %v1249
        %v1251 = vpop.f32.mrb[0].mxu0
        %1252 = vmatprep.mubr.bf16.mxu0 0
        %1253 = vmatmul.mubr.bf16.gmra.mrb[0].mxu0 %v1183
        %v1254 = vpop.f32.mrb[0].mxu0
        %v1255 = vadd.f32 0.0, %v1254
        %v1256 = vpop.f32.mrb[0].mxu0
        %v1257 = vpop.f32.mrb[0].mxu0
        %v1258 = vadd.f32 0.0, %v1257
        %v1259 = vpop.f32.mrb[0].mxu0
        %1260 = vmatprep.mubr.bf16.mxu0 0
        %1261 = vmatmul.mubr.bf16.gmra.mrb[0].mxu0 %v1184
        %v1262 = vpop.f32.mrb[0].mxu0
        %v1263 = vadd.f32 0.0, %v1262
        %v1264 = vpop.f32.mrb[0].mxu0
        %v1265 = vpop.f32.mrb[0].mxu0
        %v1266 = vadd.f32 0.0, %v1265
        %v1267 = vpop.f32.mrb[0].mxu0
        %1268 = vmatprep.mubr.bf16.mxu0 0
        %1269 = vmatmul.mubr.bf16.gmra.mrb[0].mxu0 %v1185
        %v1270 = vpop.f32.mrb[0].mxu0
        %v1271 = vadd.f32 0.0, %v1270
        %v1272 = vpop.f32.mrb[0].mxu0
        %v1273 = vpop.f32.mrb[0].mxu0
        %v1274 = vadd.f32 0.0, %v1273
        %v1275 = vpop.f32.mrb[0].mxu0
        %1276 = vmatprep.mubr.bf16.mxu0 0
        %1277 = vmatmul.mubr.bf16.gmra.mrb[0].mxu0 %v1186
        %v1278 = vpop.f32.mrb[0].mxu0
        %v1279 = vadd.f32 0.0, %v1278
        %v1280 = vpop.f32.mrb[0].mxu0
        %v1281 = vpop.f32.mrb[0].mxu0
        %v1282 = vadd.f32 0.0, %v1281
        %v1283 = vpop.f32.mrb[0].mxu0
        %1284 = vmatprep.mubr.bf16.mxu0 0
        %1285 = vmatmul.mubr.bf16.gmra.mrb[0].mxu0 %v1187
        %v1286 = vpop.f32.mrb[0].mxu0
        %v1287 = vadd.f32 0.0, %v1286
        %v1288 = vpop.f32.mrb[0].mxu0
        %v1289 = vpop.f32.mrb[0].mxu0
        %v1290 = vadd.f32 0.0, %v1289
        %v1291 = vpop.f32.mrb[0].mxu0
        %1292 = vdwg.mxu0
        %v1293 = vlaneseq
        %v1294 = vshrl.u32 %v1293, 7
        %v1295 = vadd.s32 %v1294, 8
        %v1296 = vadd.s32 %v1294, 16
        %v1297 = vadd.s32 %v1294, 24
        %v1298 = vadd.s32 %v1294, 32
        %v1299 = vadd.s32 %v1294, 40
        %v1300 = vadd.s32 %v1294, 48
        %v1301 = vadd.s32 %v1294, 56
        %v1302 = vadd.s32 %v1294, 64
        %v1303 = vadd.s32 %v1294, 72
        %v1304 = vadd.s32 %v1294, 80
        %v1305 = vadd.s32 %v1294, 88
        %v1306 = vadd.s32 %v1294, 96
        %v1307 = vadd.s32 %v1294, 104
        %v1308 = vadd.s32 %v1294, 112
        %v1309 = vadd.s32 %v1294, 120
        %v1310 = vlaneseq
        %v1311 = vand.u32 %v1310, 127
        %vm1312 = vcmp.ge.s32.totalorder %v1294, %v1311
        %vm1313 = vcmp.ge.s32.totalorder %v1295, %v1311
        %vm1314 = vcmp.ge.s32.totalorder %v1296, %v1311
        %vm1315 = vcmp.ge.s32.totalorder %v1297, %v1311
        %vm1316 = vcmp.ge.s32.totalorder %v1298, %v1311
        %vm1317 = vcmp.ge.s32.totalorder %v1299, %v1311
        %vm1318 = vcmp.ge.s32.totalorder %v1300, %v1311
        %vm1319 = vcmp.ge.s32.totalorder %v1301, %v1311
        %vm1320 = vcmp.ge.s32.totalorder %v1302, %v1311
        %vm1321 = vcmp.ge.s32.totalorder %v1303, %v1311
        %vm1322 = vcmp.ge.s32.totalorder %v1304, %v1311
        %vm1323 = vcmp.ge.s32.totalorder %v1305, %v1311
        %vm1324 = vcmp.ge.s32.totalorder %v1306, %v1311
        %vm1325 = vcmp.ge.s32.totalorder %v1307, %v1311
        %vm1326 = vcmp.ge.s32.totalorder %v1308, %v1311
        %vm1327 = vcmp.ge.s32.totalorder %v1309, %v1311
        %v1328 = vsel %vm1312, %v1231, -inf
        %v1329 = vsel %vm1313, %v1234, -inf
        %v1330 = vsel %vm1314, %v1239, -inf
        %v1331 = vsel %vm1315, %v1242, -inf
        %v1332 = vsel %vm1316, %v1247, -inf
        %v1333 = vsel %vm1317, %v1250, -inf
        %v1334 = vsel %vm1318, %v1255, -inf
        %v1335 = vsel %vm1319, %v1258, -inf
        %v1336 = vsel %vm1320, %v1263, -inf
        %v1337 = vsel %vm1321, %v1266, -inf
        %v1338 = vsel %vm1322, %v1271, -inf
        %v1339 = vsel %vm1323, %v1274, -inf
        %v1340 = vsel %vm1324, %v1279, -inf
        %v1341 = vsel %vm1325, %v1282, -inf
        %v1342 = vsel %vm1326, %v1287, -inf
        %v1343 = vsel %vm1327, %v1290, -inf
        %1344 = vmax.xlane.f32.xlu0 %v1328
        %v1345 = vpop.xlane.xlu0 %1344
        %1346 = vmax.xlane.f32.xlu0 %v1329
        %v1347 = vpop.xlane.xlu0 %1346
        %1348 = vmax.xlane.f32.xlu0 %v1330
        %v1349 = vpop.xlane.xlu0 %1348
        %1350 = vmax.xlane.f32.xlu0 %v1331
        %v1351 = vpop.xlane.xlu0 %1350
        %1352 = vmax.xlane.f32.xlu0 %v1332
        %v1353 = vpop.xlane.xlu0 %1352
        %1354 = vmax.xlane.f32.xlu0 %v1333
        %v1355 = vpop.xlane.xlu0 %1354
        %1356 = vmax.xlane.f32.xlu0 %v1334
        %v1357 = vpop.xlane.xlu0 %1356
        %1358 = vmax.xlane.f32.xlu0 %v1335
        %v1359 = vpop.xlane.xlu0 %1358
        %1360 = vmax.xlane.f32.xlu0 %v1336
        %v1361 = vpop.xlane.xlu0 %1360
        %1362 = vmax.xlane.f32.xlu0 %v1337
        %v1363 = vpop.xlane.xlu0 %1362
        %1364 = vmax.xlane.f32.xlu0 %v1338
        %v1365 = vpop.xlane.xlu0 %1364
        %1366 = vmax.xlane.f32.xlu0 %v1339
        %v1367 = vpop.xlane.xlu0 %1366
        %1368 = vmax.xlane.f32.xlu0 %v1340
        %v1369 = vpop.xlane.xlu0 %1368
        %1370 = vmax.xlane.f32.xlu0 %v1341
        %v1371 = vpop.xlane.xlu0 %1370
        %1372 = vmax.xlane.f32.xlu0 %v1342
        %v1373 = vpop.xlane.xlu0 %1372
        %1374 = vmax.xlane.f32.xlu0 %v1343
        %v1375 = vpop.xlane.xlu0 %1374
        %v1376 = vsub.f32 %v1328, %v1345
        %v1377 = vsub.f32 %v1329, %v1347
        %v1378 = vsub.f32 %v1330, %v1349
        %v1379 = vsub.f32 %v1331, %v1351
        %v1380 = vsub.f32 %v1332, %v1353
        %v1381 = vsub.f32 %v1333, %v1355
        %v1382 = vsub.f32 %v1334, %v1357
        %v1383 = vsub.f32 %v1335, %v1359
        %v1384 = vsub.f32 %v1336, %v1361
        %v1385 = vsub.f32 %v1337, %v1363
        %v1386 = vsub.f32 %v1338, %v1365
        %v1387 = vsub.f32 %v1339, %v1367
        %v1388 = vsub.f32 %v1340, %v1369
        %v1389 = vsub.f32 %v1341, %v1371
        %v1390 = vsub.f32 %v1342, %v1373
        %v1391 = vsub.f32 %v1343, %v1375
        %v1392 = vmul.f32 %v1376, 1.442695
        %v1393 = vpow.pop %v1392
        %v1394 = vmul.f32 %v1377, 1.442695
        %v1395 = vpow.pop %v1394
        %v1396 = vmul.f32 %v1378, 1.442695
        %v1397 = vpow.pop %v1396
        %v1398 = vmul.f32 %v1379, 1.442695
        %v1399 = vpow.pop %v1398
        %v1400 = vmul.f32 %v1380, 1.442695
        %v1401 = vpow.pop %v1400
        %v1402 = vmul.f32 %v1381, 1.442695
        %v1403 = vpow.pop %v1402
        %v1404 = vmul.f32 %v1382, 1.442695
        %v1405 = vpow.pop %v1404
        %v1406 = vmul.f32 %v1383, 1.442695
        %v1407 = vpow.pop %v1406
        %v1408 = vmul.f32 %v1384, 1.442695
        %v1409 = vpow.pop %v1408
        %v1410 = vmul.f32 %v1385, 1.442695
        %v1411 = vpow.pop %v1410
        %v1412 = vmul.f32 %v1386, 1.442695
        %v1413 = vpow.pop %v1412
        %v1414 = vmul.f32 %v1387, 1.442695
        %v1415 = vpow.pop %v1414
        %v1416 = vmul.f32 %v1388, 1.442695
        %v1417 = vpow.pop %v1416
        %v1418 = vmul.f32 %v1389, 1.442695
        %v1419 = vpow.pop %v1418
        %v1420 = vmul.f32 %v1390, 1.442695
        %v1421 = vpow.pop %v1420
        %v1422 = vmul.f32 %v1391, 1.442695
        %v1423 = vpow.pop %v1422
        %1424 = vadd.xlane.f32.xlu0 %v1393
        %v1425 = vpop.xlane.xlu0 %1424
        %1426 = vadd.xlane.f32.xlu0 %v1395
        %v1427 = vpop.xlane.xlu0 %1426
        %1428 = vadd.xlane.f32.xlu0 %v1397
        %v1429 = vpop.xlane.xlu0 %1428
        %1430 = vadd.xlane.f32.xlu0 %v1399
        %v1431 = vpop.xlane.xlu0 %1430
        %1432 = vadd.xlane.f32.xlu0 %v1401
        %v1433 = vpop.xlane.xlu0 %1432
        %1434 = vadd.xlane.f32.xlu0 %v1403
        %v1435 = vpop.xlane.xlu0 %1434
        %1436 = vadd.xlane.f32.xlu0 %v1405
        %v1437 = vpop.xlane.xlu0 %1436
        %1438 = vadd.xlane.f32.xlu0 %v1407
        %v1439 = vpop.xlane.xlu0 %1438
        %1440 = vadd.xlane.f32.xlu0 %v1409
        %v1441 = vpop.xlane.xlu0 %1440
        %1442 = vadd.xlane.f32.xlu0 %v1411
        %v1443 = vpop.xlane.xlu0 %1442
        %1444 = vadd.xlane.f32.xlu0 %v1413
        %v1445 = vpop.xlane.xlu0 %1444
        %1446 = vadd.xlane.f32.xlu0 %v1415
        %v1447 = vpop.xlane.xlu0 %1446
        %1448 = vadd.xlane.f32.xlu0 %v1417
        %v1449 = vpop.xlane.xlu0 %1448
        %1450 = vadd.xlane.f32.xlu0 %v1419
        %v1451 = vpop.xlane.xlu0 %1450
        %1452 = vadd.xlane.f32.xlu0 %v1421
        %v1453 = vpop.xlane.xlu0 %1452
        %1454 = vadd.xlane.f32.xlu0 %v1423
        %v1455 = vpop.xlane.xlu0 %1454
        %v1456 = vpack.c.bf16 %v1395, %v1393
        %v1457 = vpack.c.bf16 %v1399, %v1397
        %v1458 = vpack.c.bf16 %v1403, %v1401
        %v1459 = vpack.c.bf16 %v1407, %v1405
        %v1460 = vpack.c.bf16 %v1411, %v1409
        %v1461 = vpack.c.bf16 %v1415, %v1413
        %v1462 = vpack.c.bf16 %v1419, %v1417
        %v1463 = vpack.c.bf16 %v1423, %v1421
        %v1464 = vpack.c.bf16 %v929, %v926
        %v1465 = vpack.c.bf16 %v937, %v934
        %v1466 = vpack.c.bf16 %v945, %v942
        %v1467 = vpack.c.bf16 %v953, %v950
        %v1468 = vpack.c.bf16 %v961, %v958
        %v1469 = vpack.c.bf16 %v969, %v966
        %v1470 = vpack.c.bf16 %v977, %v974
        %v1471 = vpack.c.bf16 %v985, %v982
        %1472 = vmatprep.subr.bf16.mxu0 0
        %1473 = vmatpush1.bf16.msra.mxu0 %v1464
        %1474 = vmatprep.subr.bf16.mxu0 0
        %1475 = vmatpush1.bf16.msra.mxu0 %v1465
        %1476 = vmatprep.subr.bf16.mxu0 0
        %1477 = vmatpush1.bf16.msra.mxu0 %v1466
        %1478 = vmatprep.subr.bf16.mxu0 0
        %1479 = vmatpush1.bf16.msra.mxu0 %v1467
        %1480 = vmatprep.subr.bf16.mxu0 0
        %1481 = vmatpush1.bf16.msra.mxu0 %v1468
        %1482 = vmatprep.subr.bf16.mxu0 0
        %1483 = vmatpush1.bf16.msra.mxu0 %v1469
        %1484 = vmatprep.subr.bf16.mxu0 0
        %1485 = vmatpush1.bf16.msra.mxu0 %v1470
        %1486 = vmatprep.subr.bf16.mxu0 0
        %1487 = vmatpush1.bf16.msra.mxu0 %v1471
        %1488 = vmatprep.subr.bf16.mxu0 0
        %1489 = vmatpush1.bf16.msra.mxu0 0
        %1490 = vmatprep.subr.bf16.mxu0 0
        %1491 = vmatpush1.bf16.msra.mxu0 0
        %1492 = vmatprep.subr.bf16.mxu0 0
        %1493 = vmatpush1.bf16.msra.mxu0 0
        %1494 = vmatprep.subr.bf16.mxu0 0
        %1495 = vmatpush1.bf16.msra.mxu0 0
        %1496 = vmatprep.subr.bf16.mxu0 0
        %1497 = vmatpush1.bf16.msra.mxu0 0
        %1498 = vmatprep.subr.bf16.mxu0 0
        %1499 = vmatpush1.bf16.msra.mxu0 0
        %1500 = vmatprep.subr.bf16.mxu0 0
        %1501 = vmatpush1.bf16.msra.mxu0 0
        %1502 = vmatprep.subr.bf16.mxu0 0
        %1503 = vmatpush1.bf16.msra.mxu0 0
        %1504 = vmatprep.mubr.bf16.mxu0 0
        %1505 = vmatmul.mubr.bf16.gmra.mrb[0].mxu0 %v1456
        %v1506 = vpop.f32.mrb[0].mxu0
        %v1507 = vadd.f32 0.0, %v1506
        %v1508 = vpop.f32.mrb[0].mxu0
        %v1509 = vpop.f32.mrb[0].mxu0
        %v1510 = vadd.f32 0.0, %v1509
        %v1511 = vpop.f32.mrb[0].mxu0
        %1512 = vmatprep.mubr.bf16.mxu0 0
        %1513 = vmatmul.mubr.bf16.gmra.mrb[0].mxu0 %v1457
        %v1514 = vpop.f32.mrb[0].mxu0
        %v1515 = vadd.f32 0.0, %v1514
        %v1516 = vpop.f32.mrb[0].mxu0
        %v1517 = vpop.f32.mrb[0].mxu0
        %v1518 = vadd.f32 0.0, %v1517
        %v1519 = vpop.f32.mrb[0].mxu0
        %1520 = vmatprep.mubr.bf16.mxu0 0
        %1521 = vmatmul.mubr.bf16.gmra.mrb[0].mxu0 %v1458
        %v1522 = vpop.f32.mrb[0].mxu0
        %v1523 = vadd.f32 0.0, %v1522
        %v1524 = vpop.f32.mrb[0].mxu0
        %v1525 = vpop.f32.mrb[0].mxu0
        %v1526 = vadd.f32 0.0, %v1525
        %v1527 = vpop.f32.mrb[0].mxu0
        %1528 = vmatprep.mubr.bf16.mxu0 0
        %1529 = vmatmul.mubr.bf16.gmra.mrb[0].mxu0 %v1459
        %v1530 = vpop.f32.mrb[0].mxu0
        %v1531 = vadd.f32 0.0, %v1530
        %v1532 = vpop.f32.mrb[0].mxu0
        %v1533 = vpop.f32.mrb[0].mxu0
        %v1534 = vadd.f32 0.0, %v1533
        %v1535 = vpop.f32.mrb[0].mxu0
        %1536 = vmatprep.mubr.bf16.mxu0 0
        %1537 = vmatmul.mubr.bf16.gmra.mrb[0].mxu0 %v1460
        %v1538 = vpop.f32.mrb[0].mxu0
        %v1539 = vadd.f32 0.0, %v1538
        %v1540 = vpop.f32.mrb[0].mxu0
        %v1541 = vpop.f32.mrb[0].mxu0
        %v1542 = vadd.f32 0.0, %v1541
        %v1543 = vpop.f32.mrb[0].mxu0
        %1544 = vmatprep.mubr.bf16.mxu0 0
        %1545 = vmatmul.mubr.bf16.gmra.mrb[0].mxu0 %v1461
        %v1546 = vpop.f32.mrb[0].mxu0
        %v1547 = vadd.f32 0.0, %v1546
        %v1548 = vpop.f32.mrb[0].mxu0
        %v1549 = vpop.f32.mrb[0].mxu0
        %v1550 = vadd.f32 0.0, %v1549
        %v1551 = vpop.f32.mrb[0].mxu0
        %1552 = vmatprep.mubr.bf16.mxu0 0
        %1553 = vmatmul.mubr.bf16.gmra.mrb[0].mxu0 %v1462
        %v1554 = vpop.f32.mrb[0].mxu0
        %v1555 = vadd.f32 0.0, %v1554
        %v1556 = vpop.f32.mrb[0].mxu0
        %v1557 = vpop.f32.mrb[0].mxu0
        %v1558 = vadd.f32 0.0, %v1557
        %v1559 = vpop.f32.mrb[0].mxu0
        %1560 = vmatprep.mubr.bf16.mxu0 0
        %1561 = vmatmul.mubr.bf16.gmra.mrb[0].mxu0 %v1463
        %v1562 = vpop.f32.mrb[0].mxu0
        %v1563 = vadd.f32 0.0, %v1562
        %v1564 = vpop.f32.mrb[0].mxu0
        %v1565 = vpop.f32.mrb[0].mxu0
        %v1566 = vadd.f32 0.0, %v1565
        %v1567 = vpop.f32.mrb[0].mxu0
        %1568 = vdwg.mxu0
        %v1569 = vrcp.pop %v1425
        %v1570 = vmul.f32 %v1507, %v1569
        %v1571 = vrcp.pop %v1427
        %v1572 = vmul.f32 %v1510, %v1571
        %v1573 = vrcp.pop %v1429
        %v1574 = vmul.f32 %v1515, %v1573
        %v1575 = vrcp.pop %v1431
        %v1576 = vmul.f32 %v1518, %v1575
        %v1577 = vrcp.pop %v1433
        %v1578 = vmul.f32 %v1523, %v1577
        %v1579 = vrcp.pop %v1435
        %v1580 = vmul.f32 %v1526, %v1579
        %v1581 = vrcp.pop %v1437
        %v1582 = vmul.f32 %v1531, %v1581
        %v1583 = vrcp.pop %v1439
        %v1584 = vmul.f32 %v1534, %v1583
        %v1585 = vrcp.pop %v1441
        %v1586 = vmul.f32 %v1539, %v1585
        %v1587 = vrcp.pop %v1443
        %v1588 = vmul.f32 %v1542, %v1587
        %v1589 = vrcp.pop %v1445
        %v1590 = vmul.f32 %v1547, %v1589
        %v1591 = vrcp.pop %v1447
        %v1592 = vmul.f32 %v1550, %v1591
        %v1593 = vrcp.pop %v1449
        %v1594 = vmul.f32 %v1555, %v1593
        %v1595 = vrcp.pop %v1451
        %v1596 = vmul.f32 %v1558, %v1595
        %v1597 = vrcp.pop %v1453
        %v1598 = vmul.f32 %v1563, %v1597
        %v1599 = vrcp.pop %v1455
        %v1600 = vmul.f32 %v1566, %v1599
        %v1601 = vpack.c.bf16 %v1572, %v1570
        %v1602 = vpack.c.bf16 %v1576, %v1574
        %v1603 = vpack.c.bf16 %v1580, %v1578
        %v1604 = vpack.c.bf16 %v1584, %v1582
        %v1605 = vpack.c.bf16 %v1588, %v1586
        %v1606 = vpack.c.bf16 %v1592, %v1590
        %v1607 = vpack.c.bf16 %v1596, %v1594
        %v1608 = vpack.c.bf16 %v1600, %v1598
        %v1609 = vld [vmem:[%s316] sm:$0xff]
        %v1610 = vld [vmem:[%s316 + $0x8] sm:$0xff]
        %v1611 = vld [vmem:[%s316 + $0x10] sm:$0xff]
        %v1612 = vld [vmem:[%s316 + $0x18] sm:$0xff]
        %v1613 = vld [vmem:[%s316 + $0x20] sm:$0xff]
        %v1614 = vld [vmem:[%s316 + $0x28] sm:$0xff]
        %v1615 = vld [vmem:[%s316 + $0x30] sm:$0xff]
        %v1616 = vld [vmem:[%s316 + $0x38] sm:$0xff]
        %v1617 = vld [vmem:[%s316 + $0x40] sm:$0xff]
        %v1618 = vld [vmem:[%s316 + $0x48] sm:$0xff]
        %v1619 = vld [vmem:[%s316 + $0x50] sm:$0xff]
        %v1620 = vld [vmem:[%s316 + $0x58] sm:$0xff]
        %v1621 = vld [vmem:[%s316 + $0x60] sm:$0xff]
        %v1622 = vld [vmem:[%s316 + $0x68] sm:$0xff]
        %v1623 = vld [vmem:[%s316 + $0x70] sm:$0xff]
        %v1624 = vld [vmem:[%s316 + $0x78] sm:$0xff]
        %v1641 = vunpack.c.l.b16 %v1609
        %v1642 = vunpack.c.h.b16 %v1609
        %v1643 = vunpack.c.l.b16 %v1610
        %v1644 = vunpack.c.h.b16 %v1610
        %v1645 = vunpack.c.l.b16 %v1611
        %v1646 = vunpack.c.h.b16 %v1611
        %v1647 = vunpack.c.l.b16 %v1612
        %v1648 = vunpack.c.h.b16 %v1612
        %v1649 = vunpack.c.l.b16 %v1613
        %v1650 = vunpack.c.h.b16 %v1613
        %v1651 = vunpack.c.l.b16 %v1614
        %v1652 = vunpack.c.h.b16 %v1614
        %v1653 = vunpack.c.l.b16 %v1615
        %v1654 = vunpack.c.h.b16 %v1615
        %v1655 = vunpack.c.l.b16 %v1616
        %v1656 = vunpack.c.h.b16 %v1616
        %v1657 = vunpack.c.l.b16 %v1617
        %v1658 = vunpack.c.h.b16 %v1617
        %v1659 = vunpack.c.l.b16 %v1618
        %v1660 = vunpack.c.h.b16 %v1618
        %v1661 = vunpack.c.l.b16 %v1619
        %v1662 = vunpack.c.h.b16 %v1619
        %v1663 = vunpack.c.l.b16 %v1620
        %v1664 = vunpack.c.h.b16 %v1620
        %v1665 = vunpack.c.l.b16 %v1621
        %v1666 = vunpack.c.h.b16 %v1621
        %v1667 = vunpack.c.l.b16 %v1622
        %v1668 = vunpack.c.h.b16 %v1622
        %v1669 = vunpack.c.l.b16 %v1623
        %v1670 = vunpack.c.h.b16 %v1623
        %v1671 = vunpack.c.l.b16 %v1624
        %v1672 = vunpack.c.h.b16 %v1624
        %v1673 = vpack.c.b16 %v1643, %v1641
        %v1674 = vpack.c.b16 %v1644, %v1642
        %v1675 = vpack.c.b16 %v1647, %v1645
        %v1676 = vpack.c.b16 %v1648, %v1646
        %v1677 = vpack.c.b16 %v1651, %v1649
        %v1678 = vpack.c.b16 %v1652, %v1650
        %v1679 = vpack.c.b16 %v1655, %v1653
        %v1680 = vpack.c.b16 %v1656, %v1654
        %v1681 = vpack.c.b16 %v1659, %v1657
        %v1682 = vpack.c.b16 %v1660, %v1658
        %v1683 = vpack.c.b16 %v1663, %v1661
        %v1684 = vpack.c.b16 %v1664, %v1662
        %v1685 = vpack.c.b16 %v1667, %v1665
        %v1686 = vpack.c.b16 %v1668, %v1666
        %v1687 = vpack.c.b16 %v1671, %v1669
        %v1688 = vpack.c.b16 %v1672, %v1670
        %1705 = vmatprep.subr.bf16.mxu0 %v1674
        %1706 = vmatpush1.bf16.msra.mxu0 %v1673
        %1707 = vmatprep.subr.bf16.mxu0 %v1676
        %1708 = vmatpush1.bf16.msra.mxu0 %v1675
        %1709 = vmatprep.subr.bf16.mxu0 %v1678
        %1710 = vmatpush1.bf16.msra.mxu0 %v1677
        %1711 = vmatprep.subr.bf16.mxu0 %v1680
        %1712 = vmatpush1.bf16.msra.mxu0 %v1679
        %1713 = vmatprep.subr.bf16.mxu0 %v1682
        %1714 = vmatpush1.bf16.msra.mxu0 %v1681
        %1715 = vmatprep.subr.bf16.mxu0 %v1684
        %1716 = vmatpush1.bf16.msra.mxu0 %v1683
        %1717 = vmatprep.subr.bf16.mxu0 %v1686
        %1718 = vmatpush1.bf16.msra.mxu0 %v1685
        %1719 = vmatprep.subr.bf16.mxu0 %v1688
        %1720 = vmatpush1.bf16.msra.mxu0 %v1687
        %1721 = vmatprep.subr.bf16.mxu0 0
        %1722 = vmatpush1.bf16.msra.mxu0 0
        %1723 = vmatprep.subr.bf16.mxu0 0
        %1724 = vmatpush1.bf16.msra.mxu0 0
        %1725 = vmatprep.subr.bf16.mxu0 0
        %1726 = vmatpush1.bf16.msra.mxu0 0
        %1727 = vmatprep.subr.bf16.mxu0 0
        %1728 = vmatpush1.bf16.msra.mxu0 0
        %1729 = vmatprep.subr.bf16.mxu0 0
        %1730 = vmatpush1.bf16.msra.mxu0 0
        %1731 = vmatprep.subr.bf16.mxu0 0
        %1732 = vmatpush1.bf16.msra.mxu0 0
        %1733 = vmatprep.subr.bf16.mxu0 0
        %1734 = vmatpush1.bf16.msra.mxu0 0
        %1735 = vmatprep.subr.bf16.mxu0 0
        %1736 = vmatpush1.bf16.msra.mxu0 0
        %1737 = vmatprep.mubr.bf16.mxu0 0
        %1738 = vmatmul.mubr.bf16.gmra.mrb[0].mxu0 %v1601
        %v1739 = vpop.f32.mrb[0].mxu0
        %v1740 = vadd.f32 0.0, %v1739
        %v1741 = vpop.f32.mrb[0].mxu0
        %v1742 = vadd.f32 0.0, %v1741
        %v1743 = vpop.f32.mrb[0].mxu0
        %v1744 = vadd.f32 0.0, %v1743
        %v1745 = vpop.f32.mrb[0].mxu0
        %v1746 = vadd.f32 0.0, %v1745
        %1747 = vmatprep.mubr.bf16.mxu0 0
        %1748 = vmatmul.mubr.bf16.gmra.mrb[0].mxu0 %v1602
        %v1749 = vpop.f32.mrb[0].mxu0
        %v1750 = vadd.f32 0.0, %v1749
        %v1751 = vpop.f32.mrb[0].mxu0
        %v1752 = vadd.f32 0.0, %v1751
        %v1753 = vpop.f32.mrb[0].mxu0
        %v1754 = vadd.f32 0.0, %v1753
        %v1755 = vpop.f32.mrb[0].mxu0
        %v1756 = vadd.f32 0.0, %v1755
        %1757 = vmatprep.mubr.bf16.mxu0 0
        %1758 = vmatmul.mubr.bf16.gmra.mrb[0].mxu0 %v1603
        %v1759 = vpop.f32.mrb[0].mxu0
        %v1760 = vadd.f32 0.0, %v1759
        %v1761 = vpop.f32.mrb[0].mxu0
        %v1762 = vadd.f32 0.0, %v1761
        %v1763 = vpop.f32.mrb[0].mxu0
        %v1764 = vadd.f32 0.0, %v1763
        %v1765 = vpop.f32.mrb[0].mxu0
        %v1766 = vadd.f32 0.0, %v1765
        %1767 = vmatprep.mubr.bf16.mxu0 0
        %1768 = vmatmul.mubr.bf16.gmra.mrb[0].mxu0 %v1604
        %v1769 = vpop.f32.mrb[0].mxu0
        %v1770 = vadd.f32 0.0, %v1769
        %v1771 = vpop.f32.mrb[0].mxu0
        %v1772 = vadd.f32 0.0, %v1771
        %v1773 = vpop.f32.mrb[0].mxu0
        %v1774 = vadd.f32 0.0, %v1773
        %v1775 = vpop.f32.mrb[0].mxu0
        %v1776 = vadd.f32 0.0, %v1775
        %1777 = vmatprep.mubr.bf16.mxu0 0
        %1778 = vmatmul.mubr.bf16.gmra.mrb[0].mxu0 %v1605
        %v1779 = vpop.f32.mrb[0].mxu0
        %v1780 = vadd.f32 0.0, %v1779
        %v1781 = vpop.f32.mrb[0].mxu0
        %v1782 = vadd.f32 0.0, %v1781
        %v1783 = vpop.f32.mrb[0].mxu0
        %v1784 = vadd.f32 0.0, %v1783
        %v1785 = vpop.f32.mrb[0].mxu0
        %v1786 = vadd.f32 0.0, %v1785
        %1787 = vmatprep.mubr.bf16.mxu0 0
        %1788 = vmatmul.mubr.bf16.gmra.mrb[0].mxu0 %v1606
        %v1789 = vpop.f32.mrb[0].mxu0
        %v1790 = vadd.f32 0.0, %v1789
        %v1791 = vpop.f32.mrb[0].mxu0
        %v1792 = vadd.f32 0.0, %v1791
        %v1793 = vpop.f32.mrb[0].mxu0
        %v1794 = vadd.f32 0.0, %v1793
        %v1795 = vpop.f32.mrb[0].mxu0
        %v1796 = vadd.f32 0.0, %v1795
        %1797 = vmatprep.mubr.bf16.mxu0 0
        %1798 = vmatmul.mubr.bf16.gmra.mrb[0].mxu0 %v1607
        %v1799 = vpop.f32.mrb[0].mxu0
        %v1800 = vadd.f32 0.0, %v1799
        %v1801 = vpop.f32.mrb[0].mxu0
        %v1802 = vadd.f32 0.0, %v1801
        %v1803 = vpop.f32.mrb[0].mxu0
        %v1804 = vadd.f32 0.0, %v1803
        %v1805 = vpop.f32.mrb[0].mxu0
        %v1806 = vadd.f32 0.0, %v1805
        %1807 = vmatprep.mubr.bf16.mxu0 0
        %1808 = vmatmul.mubr.bf16.gmra.mrb[0].mxu0 %v1608
        %v1809 = vpop.f32.mrb[0].mxu0
        %v1810 = vadd.f32 0.0, %v1809
        %v1811 = vpop.f32.mrb[0].mxu0
        %v1812 = vadd.f32 0.0, %v1811
        %v1813 = vpop.f32.mrb[0].mxu0
        %v1814 = vadd.f32 0.0, %v1813
        %v1815 = vpop.f32.mrb[0].mxu0
        %v1816 = vadd.f32 0.0, %v1815
        %1817 = vdwg.mxu0
        %p1818 = scmp.eq.s32.totalorder %s31, 0
        // Predicated region
        $region61: #{tpu_custom_call.1} parent=39 // pred_check
          %p1819 = pneg %p1818
        $region62: #{tpu_custom_call.1} parent=39 // pred_check_branch
          %1821 = sbr.rel (%p1819) target = $region64
        $region63: #{tpu_custom_call.1} parent=39 // pred_region
          %1822 = vst [vmem:[%s360] sm:$0xff] %v1740
          %1823 = vst [vmem:[%s360 + $0x8] sm:$0xff] %v1742
          %1824 = vst [vmem:[%s360 + $0x10] sm:$0xff] %v1744
          %1825 = vst [vmem:[%s360 + $0x18] sm:$0xff] %v1746
          %1826 = vst [vmem:[%s360 + $0x20] sm:$0xff] %v1750
          %1827 = vst [vmem:[%s360 + $0x28] sm:$0xff] %v1752
          %1828 = vst [vmem:[%s360 + $0x30] sm:$0xff] %v1754
          %1829 = vst [vmem:[%s360 + $0x38] sm:$0xff] %v1756
          %1830 = vst [vmem:[%s360 + $0x40] sm:$0xff] %v1760
          %1831 = vst [vmem:[%s360 + $0x48] sm:$0xff] %v1762
          %1832 = vst [vmem:[%s360 + $0x50] sm:$0xff] %v1764
          %1833 = vst [vmem:[%s360 + $0x58] sm:$0xff] %v1766
          %1834 = vst [vmem:[%s360 + $0x60] sm:$0xff] %v1770
          %1835 = vst [vmem:[%s360 + $0x68] sm:$0xff] %v1772
          %1836 = vst [vmem:[%s360 + $0x70] sm:$0xff] %v1774
          %1837 = vst [vmem:[%s360 + $0x78] sm:$0xff] %v1776
          %1838 = vst [vmem:[%s360 + $0x80] sm:$0xff] %v1780
          %1839 = vst [vmem:[%s360 + $0x88] sm:$0xff] %v1782
          %1840 = vst [vmem:[%s360 + $0x90] sm:$0xff] %v1784
          %1841 = vst [vmem:[%s360 + $0x98] sm:$0xff] %v1786
          %1842 = vst [vmem:[%s360 + $0xa0] sm:$0xff] %v1790
          %1843 = vst [vmem:[%s360 + $0xa8] sm:$0xff] %v1792
          %1844 = vst [vmem:[%s360 + $0xb0] sm:$0xff] %v1794
          %1845 = vst [vmem:[%s360 + $0xb8] sm:$0xff] %v1796
          %1846 = vst [vmem:[%s360 + $0xc0] sm:$0xff] %v1800
          %1847 = vst [vmem:[%s360 + $0xc8] sm:$0xff] %v1802
          %1848 = vst [vmem:[%s360 + $0xd0] sm:$0xff] %v1804
          %1849 = vst [vmem:[%s360 + $0xd8] sm:$0xff] %v1806
          %1850 = vst [vmem:[%s360 + $0xe0] sm:$0xff] %v1810
          %1851 = vst [vmem:[%s360 + $0xe8] sm:$0xff] %v1812
          %1852 = vst [vmem:[%s360 + $0xf0] sm:$0xff] %v1814
          %1853 = vst [vmem:[%s360 + $0xf8] sm:$0xff] %v1816
        $region64: #{tpu_custom_call.1} parent=39 // pred_fallthru
          _
        %p1854 = scmp.gt.s32.totalorder %s31, 0
        // Predicated region
        $region65: #{tpu_custom_call.1} parent=39 // pred_check
          %p1855 = pneg %p1854
        $region66: #{tpu_custom_call.1} parent=39 // pred_check_branch
          %1857 = sbr.rel (%p1855) target = $region68
        $region67: #{tpu_custom_call.1} parent=39 // pred_region
          %v1858 = vld [vmem:[%s360] sm:$0xff]
          %v1859 = vld [vmem:[%s360 + $0x8] sm:$0xff]
          %v1860 = vld [vmem:[%s360 + $0x10] sm:$0xff]
          %v1861 = vld [vmem:[%s360 + $0x18] sm:$0xff]
          %v1862 = vld [vmem:[%s360 + $0x20] sm:$0xff]
          %v1863 = vld [vmem:[%s360 + $0x28] sm:$0xff]
          %v1864 = vld [vmem:[%s360 + $0x30] sm:$0xff]
          %v1865 = vld [vmem:[%s360 + $0x38] sm:$0xff]
          %v1866 = vld [vmem:[%s360 + $0x40] sm:$0xff]
          %v1867 = vld [vmem:[%s360 + $0x48] sm:$0xff]
          %v1868 = vld [vmem:[%s360 + $0x50] sm:$0xff]
          %v1869 = vld [vmem:[%s360 + $0x58] sm:$0xff]
          %v1870 = vld [vmem:[%s360 + $0x60] sm:$0xff]
          %v1871 = vld [vmem:[%s360 + $0x68] sm:$0xff]
          %v1872 = vld [vmem:[%s360 + $0x70] sm:$0xff]
          %v1873 = vld [vmem:[%s360 + $0x78] sm:$0xff]
          %v1874 = vld [vmem:[%s360 + $0x80] sm:$0xff]
          %v1875 = vld [vmem:[%s360 + $0x88] sm:$0xff]
          %v1876 = vld [vmem:[%s360 + $0x90] sm:$0xff]
          %v1877 = vld [vmem:[%s360 + $0x98] sm:$0xff]
          %v1878 = vld [vmem:[%s360 + $0xa0] sm:$0xff]
          %v1879 = vld [vmem:[%s360 + $0xa8] sm:$0xff]
          %v1880 = vld [vmem:[%s360 + $0xb0] sm:$0xff]
          %v1881 = vld [vmem:[%s360 + $0xb8] sm:$0xff]
          %v1882 = vld [vmem:[%s360 + $0xc0] sm:$0xff]
          %v1883 = vld [vmem:[%s360 + $0xc8] sm:$0xff]
          %v1884 = vld [vmem:[%s360 + $0xd0] sm:$0xff]
          %v1885 = vld [vmem:[%s360 + $0xd8] sm:$0xff]
          %v1886 = vld [vmem:[%s360 + $0xe0] sm:$0xff]
          %v1887 = vld [vmem:[%s360 + $0xe8] sm:$0xff]
          %v1888 = vld [vmem:[%s360 + $0xf0] sm:$0xff]
          %v1889 = vld [vmem:[%s360 + $0xf8] sm:$0xff]
          %v1890 = vadd.f32 %v1858, %v1740
          %v1891 = vadd.f32 %v1859, %v1742
          %v1892 = vadd.f32 %v1860, %v1744
          %v1893 = vadd.f32 %v1861, %v1746
          %v1894 = vadd.f32 %v1862, %v1750
          %v1895 = vadd.f32 %v1863, %v1752
          %v1896 = vadd.f32 %v1864, %v1754
          %v1897 = vadd.f32 %v1865, %v1756
          %v1898 = vadd.f32 %v1866, %v1760
          %v1899 = vadd.f32 %v1867, %v1762
          %v1900 = vadd.f32 %v1868, %v1764
          %v1901 = vadd.f32 %v1869, %v1766
          %v1902 = vadd.f32 %v1870, %v1770
          %v1903 = vadd.f32 %v1871, %v1772
          %v1904 = vadd.f32 %v1872, %v1774
          %v1905 = vadd.f32 %v1873, %v1776
          %v1906 = vadd.f32 %v1874, %v1780
          %v1907 = vadd.f32 %v1875, %v1782
          %v1908 = vadd.f32 %v1876, %v1784
          %v1909 = vadd.f32 %v1877, %v1786
          %v1910 = vadd.f32 %v1878, %v1790
          %v1911 = vadd.f32 %v1879, %v1792
          %v1912 = vadd.f32 %v1880, %v1794
          %v1913 = vadd.f32 %v1881, %v1796
          %v1914 = vadd.f32 %v1882, %v1800
          %v1915 = vadd.f32 %v1883, %v1802
          %v1916 = vadd.f32 %v1884, %v1804
          %v1917 = vadd.f32 %v1885, %v1806
          %v1918 = vadd.f32 %v1886, %v1810
          %v1919 = vadd.f32 %v1887, %v1812
          %v1920 = vadd.f32 %v1888, %v1814
          %v1921 = vadd.f32 %v1889, %v1816
          %1922 = vst [vmem:[%s360] sm:$0xff] %v1890
          %1923 = vst [vmem:[%s360 + $0x8] sm:$0xff] %v1891
          %1924 = vst [vmem:[%s360 + $0x10] sm:$0xff] %v1892
          %1925 = vst [vmem:[%s360 + $0x18] sm:$0xff] %v1893
          %1926 = vst [vmem:[%s360 + $0x20] sm:$0xff] %v1894
          %1927 = vst [vmem:[%s360 + $0x28] sm:$0xff] %v1895
          %1928 = vst [vmem:[%s360 + $0x30] sm:$0xff] %v1896
          %1929 = vst [vmem:[%s360 + $0x38] sm:$0xff] %v1897
          %1930 = vst [vmem:[%s360 + $0x40] sm:$0xff] %v1898
          %1931 = vst [vmem:[%s360 + $0x48] sm:$0xff] %v1899
          %1932 = vst [vmem:[%s360 + $0x50] sm:$0xff] %v1900
          %1933 = vst [vmem:[%s360 + $0x58] sm:$0xff] %v1901
          %1934 = vst [vmem:[%s360 + $0x60] sm:$0xff] %v1902
          %1935 = vst [vmem:[%s360 + $0x68] sm:$0xff] %v1903
          %1936 = vst [vmem:[%s360 + $0x70] sm:$0xff] %v1904
          %1937 = vst [vmem:[%s360 + $0x78] sm:$0xff] %v1905
          %1938 = vst [vmem:[%s360 + $0x80] sm:$0xff] %v1906
          %1939 = vst [vmem:[%s360 + $0x88] sm:$0xff] %v1907
          %1940 = vst [vmem:[%s360 + $0x90] sm:$0xff] %v1908
          %1941 = vst [vmem:[%s360 + $0x98] sm:$0xff] %v1909
          %1942 = vst [vmem:[%s360 + $0xa0] sm:$0xff] %v1910
          %1943 = vst [vmem:[%s360 + $0xa8] sm:$0xff] %v1911
          %1944 = vst [vmem:[%s360 + $0xb0] sm:$0xff] %v1912
          %1945 = vst [vmem:[%s360 + $0xb8] sm:$0xff] %v1913
          %1946 = vst [vmem:[%s360 + $0xc0] sm:$0xff] %v1914
          %1947 = vst [vmem:[%s360 + $0xc8] sm:$0xff] %v1915
          %1948 = vst [vmem:[%s360 + $0xd0] sm:$0xff] %v1916
          %1949 = vst [vmem:[%s360 + $0xd8] sm:$0xff] %v1917
          %1950 = vst [vmem:[%s360 + $0xe0] sm:$0xff] %v1918
          %1951 = vst [vmem:[%s360 + $0xe8] sm:$0xff] %v1919
          %1952 = vst [vmem:[%s360 + $0xf0] sm:$0xff] %v1920
          %1953 = vst [vmem:[%s360 + $0xf8] sm:$0xff] %v1921
        $region68: #{tpu_custom_call.1} parent=39 // pred_fallthru
          _
        %s1954 = sand.u32 %s166, 1
        %s1955 = scalar_lea.sflag [#allocation4], %s1954
        %s1956 = sand.u32 %s166, 1
        %s1957 = smul.addr %s1956, 256
        %s1958 = scalar_lea.vmem [#allocation11], %s1957
        // Predicated region
        $region69: #{tpu_custom_call.1} parent=39 // pred_check
          %p1959 = pneg %p176
        $region70: #{tpu_custom_call.1} parent=39 // pred_check_branch
          %1961 = sbr.rel (%p1959) target = $region72
        $region71: #{tpu_custom_call.1} parent=39 // pred_region
          %s1963 = ssub.s32 4096, 4096
          %1964 = vsyncadd %s1955, %s1963
          %s1965 = smul.addr %s30, 32
          %s1966 = smul.addr %s1965, 128
          %s1967 = scalar_lea.hbm %s5, %s1966
          %s1968 = sshll.u32 %s1958, 4
          %s1969 = int_to_ptr.vmem [resolvable:$true] %s1968
          %1974 = dma.vmem_to_hbm [thread:$0]  %s1969, 4096, %s1967, %s1955, 256, 256, 16
        $region72: #{tpu_custom_call.1} parent=39 // pred_fallthru
          _
      $region40: #{tpu_custom_call.1} parent=5 // pred_fallthru
        _
      %p1975 = scmp.le.s32.totalorder 2, %s21
      // Predicated region
      $region73: #{tpu_custom_call.1} parent=5 // pred_check
        %p1976 = pneg %p1975
      $region74: #{tpu_custom_call.1} parent=5 // pred_check_branch
        %1978 = sbr.rel (%p1976) target = $region76
      $region75: #{tpu_custom_call.1} parent=5 // pred_region
        %s1979 = ssub.s32 %s21, 2
        // Predicated region
        $region77: #{tpu_custom_call.1} parent=75 // pred_check
          %p1980 = pneg %p182
        $region78: #{tpu_custom_call.1} parent=75 // pred_check_branch
          %1982 = sbr.rel (%p1980) target = $region80
        $region79: #{tpu_custom_call.1} parent=75 // pred_region
          %s1983 = sand.u32 %s167, 1
          %s1984 = scalar_lea.sflag [#allocation4], %s1983
          %s1985 = sand.u32 %s167, 1
          %s1986 = smul.addr %s1985, 256
          %s1987 = scalar_lea.vmem [#allocation11], %s1986
          %1988 = dma.done %s1984, 4096
        $region80: #{tpu_custom_call.1} parent=75 // pred_fallthru
          _
      $region76: #{tpu_custom_call.1} parent=5 // pred_fallthru
        _
    $region6: #{tpu_custom_call.1} parent=1 // loop_footer
      %s25 = sadd.s32 1, %s21
    $region7: #{tpu_custom_call.1} parent=1 // loop_footer_branch
      %20 = sbr.rel target = $region3
    $region8: #{tpu_custom_call.1} parent=1 // loop_exit
      _
    %1989 = vsyncpa [#allocation3], 1
    %s1990 = scalar_lea.sflag [#allocation3], 1
    %1991 = vsyncpa %s1990, 1
    %1992 = vsyncpa [#allocation6], 1
    %s1993 = scalar_lea.sflag [#allocation6], 1
    %1994 = vsyncpa %s1993, 1
    %1995 = vsyncpa [#allocation9], 1
    %1996 = vsyncpa [#allocation4], 1
    %s1997 = scalar_lea.sflag [#allocation4], 1
    %1998 = vsyncpa %s1997, 1

</llo_original>
